<compile_context>
chip_gen: v6e
topology: v6e:2x2x1
jax: 0.10.0
libtpu: 0.0.40
codegen_flags: <defaults>
</compile_context>

<pallas_src>
import functools

import jax
import jax.numpy as jnp
from jax.experimental import pallas as pl
from jax.experimental.pallas import tpu as pltpu


def _round_up(v, m):
    return (v + m - 1) // m * m


# ----------------------------------------------------------------------------
# Pallas kernel: fused im2col + GEMM + bias for ONE image of a 3x3/stride-2 conv.
#
#   xsd_ref : [1, 4, Hh, Wh, Cin]  parity planes of the padded input
#             plane p = 2*r + c holds padded_input[2a + r, 2b + c]
#   w_ref   : [Kp, Cout]           (kh, kw, ci)-ordered weights, K zero-padded
#   b_ref   : [1, Cout]            float32 bias
#   o_ref   : [1, Ho*Wo, Cout]     flattened spatial output for this image
# ----------------------------------------------------------------------------
def _conv3x3_s2_kernel(xsd_ref, w_ref, b_ref, o_ref, *, ho, wo):
    cin = xsd_ref.shape[-1]
    kp = w_ref.shape[0]
    k = 9 * cin

    # 9 taps, all unit-stride slices thanks to the parity-plane layout:
    # output (i, j), tap (kh, kw) = padded[2i+kh, 2j+kw] = plane[2r+c][i+dh, j+dw]
    taps = []
    for kh in range(3):
        dh, r = divmod(kh, 2)          # kh = 2*dh + r
        for kw in range(3):
            dw, c = divmod(kw, 2)      # kw = 2*dw + c
            taps.append(xsd_ref[0, 2 * r + c, dh:dh + ho, dw:dw + wo, :])
    if kp > k:                         # zero-pad K up to the aligned weight rows
        taps.append(jnp.zeros((ho, wo, kp - k), dtype=xsd_ref.dtype))

    patches = jnp.concatenate(taps, axis=-1)       # [ho, wo, kp]
    patches = patches.reshape(ho * wo, kp)         # wo % 16 == 0 -> layout-preserving

    acc = jnp.dot(patches, w_ref[...], preferred_element_type=jnp.float32)
    acc = acc + b_ref[...]                         # f32 bias, broadcasts over rows
    o_ref[0] = acc.astype(o_ref.dtype)


# ----------------------------------------------------------------------------
# One conv stage: Conv2d(k=3, s=2, p=1) over NHWC, kernel does im2col + GEMM.
# ----------------------------------------------------------------------------
def _conv3x3_s2(x_nhwc, w_hwio, bias, *, compute_dtype, out_dtype):
    n, hi, wi, cin = x_nhwc.shape
    assert hi % 2 == 0 and wi % 2 == 0, "spatial dims must be even"
    cout = w_hwio.shape[-1]
    ho, wo = hi // 2, wi // 2
    wo_p = _round_up(wo, 16)           # keep GEMM rows / reshape sublane-aligned
    hp = hi + 2                        # pad-1 rows (even)
    wp = 2 * wo_p + 2                  # enough padded cols for wo_p outputs (even)
    k = 9 * cin
    kp = _round_up(k, 16)

    # Glue (cheap, ~1x input bytes): spatial zero-pad + space-to-depth planes.
    xp = jnp.pad(x_nhwc, ((0, 0), (1, 1), (1, wp - 1 - wi), (0, 0)))
    hh, wh = hp // 2, wp // 2
    xsd = xp.reshape(n, hh, 2, wh, 2, cin).transpose(0, 2, 4, 1, 3, 5)
    xsd = xsd.reshape(n, 4, hh, wh, cin).astype(compute_dtype)

    w_mat = w_hwio.reshape(k, cout)                         # (kh, kw, ci) x cout
    w_mat = jnp.pad(w_mat, ((0, kp - k), (0, 0))).astype(compute_dtype)
    b_row = bias.reshape(1, cout).astype(jnp.float32)

    out = pl.pallas_call(
        functools.partial(_conv3x3_s2_kernel, ho=ho, wo=wo_p),
        out_shape=jax.ShapeDtypeStruct((n, ho * wo_p, cout), out_dtype),
        grid=(n,),
        in_specs=[
            pl.BlockSpec((1, 4, hh, wh, cin), lambda i: (i, 0, 0, 0, 0)),
            pl.BlockSpec((kp, cout), lambda i: (0, 0)),
            pl.BlockSpec((1, cout), lambda i: (0, 0)),
        ],
        out_specs=pl.BlockSpec((1, ho * wo_p, cout), lambda i: (i, 0, 0)),
        compiler_params=pltpu.CompilerParams(
            dimension_semantics=("parallel",)),
    )(xsd, w_mat, b_row)

    # Drop the alignment-only extra output columns (tiny XLA slice).
    return out.reshape(n, ho, wo_p, cout)[:, :, :wo, :]


# ----------------------------------------------------------------------------
# ConvTokenizer forward (norm_layer=None in the reference config)
# ----------------------------------------------------------------------------
def conv_tokenizer(x_nchw, params, *, compute_dtype=jnp.bfloat16):
    """Equivalent of ConvTokenizer.forward: proj(x).permute(0, 2, 3, 1)."""
    _, _, h, w = x_nchw.shape
    assert h % 4 == 0 and w % 4 == 0, "H, W must be multiples of 4"
    x = jnp.transpose(x_nchw, (0, 2, 3, 1))                    # NCHW -> NHWC
    x = _conv3x3_s2(x, params["w1"], params["b1"],
                    compute_dtype=compute_dtype, out_dtype=compute_dtype)
    x = _conv3x3_s2(x, params["w2"], params["b2"],
                    compute_dtype=compute_dtype, out_dtype=jnp.float32)
    return x                                                    # NHWC


def init_params(key, in_chans=3, embed_dim=32):
    k1, k2, k3, k4 = jax.random.split(key, 4)
    c1 = embed_dim // 2
    return {
        "w1": jax.random.normal(k1, (3, 3, in_chans, c1), jnp.float32) * 0.1,
        "b1": jax.random.normal(k2, (c1,), jnp.float32) * 0.1,
        "w2": jax.random.normal(k3, (3, 3, c1, embed_dim), jnp.float32) * 0.1,
        "b2": jax.random.normal(k4, (embed_dim,), jnp.float32) * 0.1,
    }


# ----------------------------------------------------------------------------
# Pure-JAX reference with the same cast points as the Pallas path.
# ----------------------------------------------------------------------------
def _reference(x_nchw, params, *, compute_dtype=jnp.float32):
    def conv(x, w, b):
        y = jax.lax.conv_general_dilated(
            x.astype(compute_dtype), w.astype(compute_dtype),
            window_strides=(2, 2), padding=((1, 1), (1, 1)),
            dimension_numbers=("NHWC", "HWIO", "NHWC"),
            preferred_element_type=jnp.float32)
        return y + b.astype(jnp.float32)
    x = jnp.transpose(x_nchw, (0, 2, 3, 1))
    y1 = conv(x, params["w1"], params["b1"]).astype(compute_dtype)
    y2 = conv(y1, params["w2"], params["b2"])
    return y2.astype(jnp.float32)


if __name__ == "__main__":
    key = jax.random.PRNGKey(0)
    kx, kparam = jax.random.split(key)

    in_chans, embed_dim = 3, 32
    x = jax.random.normal(kx, (2, in_chans, 16, 16), jnp.float32)   # NCHW
    params = init_params(kparam, in_chans=in_chans, embed_dim=embed_dim)

    # float32 path: exact semantics of the PyTorch module (norm_layer=None).
    f32_fn = jax.jit(functools.partial(conv_tokenizer, compute_dtype=jnp.float32))
    out_f32 = jax.block_until_ready(f32_fn(x, params))
    assert out_f32.shape == (2, 4, 4, embed_dim), out_f32.shape
    ref_f32 = _reference(x, params, compute_dtype=jnp.float32)
    assert jnp.allclose(out_f32, ref_f32, atol=1e-4, rtol=1e-4), "f32 mismatch"

    # bfloat16 fast path (default): reference uses the same quantization points,
    # so only accumulation order differs.
    bf16_fn = jax.jit(functools.partial(conv_tokenizer, compute_dtype=jnp.bfloat16))
    out_bf16 = jax.block_until_ready(bf16_fn(x, params))
    ref_bf16 = _reference(x, params, compute_dtype=jnp.bfloat16)
    assert jnp.allclose(out_bf16, ref_bf16, atol=2e-3, rtol=2e-3), "bf16 mismatch"

    print("KERNEL_OK")
</pallas_src>

<mosaic_0001>
module attributes {stable_mosaic.version = 11 : i64} {
  func.func @_conv3x3_s2_kernel(%arg0: i32, %arg1: memref<1x4x9x17x3xf32, #tpu.memory_space<vmem>>, %arg2: memref<32x16xf32, #tpu.memory_space<vmem>>, %arg3: memref<1x16xf32, #tpu.memory_space<vmem>>, %arg4: memref<1x128x16xf32, #tpu.memory_space<vmem>>) attributes {dimension_semantics = [#tpu.dimension_semantics<parallel>], iteration_bounds = array<i64: 2>, scalar_prefetch = 0 : i64, scratch_operands = 0 : i64, tpu.core_type = #tpu.core_type<tc>, window_params = [{transform_indices = @transform_0, window_bounds = array<i64: 1, 4, 9, 17, 3>}, {pipeline_mode = #tpu.pipeline_mode<synchronous>, transform_indices = @transform_1, window_bounds = array<i64: 32, 16>}, {pipeline_mode = #tpu.pipeline_mode<synchronous>, transform_indices = @transform_2, window_bounds = array<i64: 1, 16>}, {transform_indices = @transform_3, window_bounds = array<i64: 1, 128, 16>}]} {
    %c0 = arith.constant 0 : index
    %c0_0 = arith.constant 0 : index
    %c0_1 = arith.constant 0 : index
    %c0_2 = arith.constant 0 : index
    %c0_3 = arith.constant 0 : index
    %0 = vector.load %arg1[%c0, %c0_0, %c0_1, %c0_2, %c0_3] : memref<1x4x9x17x3xf32, #tpu.memory_space<vmem>>, vector<1x1x8x16x3xf32>
    %1 = vector.shape_cast %0 : vector<1x1x8x16x3xf32> to vector<8x16x3xf32>
    %c0_4 = arith.constant 0 : index
    %c1 = arith.constant 1 : index
    %c0_5 = arith.constant 0 : index
    %c0_6 = arith.constant 0 : index
    %c0_7 = arith.constant 0 : index
    %2 = vector.load %arg1[%c0_4, %c1, %c0_5, %c0_6, %c0_7] : memref<1x4x9x17x3xf32, #tpu.memory_space<vmem>>, vector<1x1x8x16x3xf32>
    %3 = vector.shape_cast %2 : vector<1x1x8x16x3xf32> to vector<8x16x3xf32>
    %c0_8 = arith.constant 0 : index
    %c0_9 = arith.constant 0 : index
    %c0_10 = arith.constant 0 : index
    %c1_11 = arith.constant 1 : index
    %c0_12 = arith.constant 0 : index
    %4 = vector.load %arg1[%c0_8, %c0_9, %c0_10, %c1_11, %c0_12] : memref<1x4x9x17x3xf32, #tpu.memory_space<vmem>>, vector<1x1x8x16x3xf32>
    %5 = vector.shape_cast %4 : vector<1x1x8x16x3xf32> to vector<8x16x3xf32>
    %c0_13 = arith.constant 0 : index
    %c2 = arith.constant 2 : index
    %c0_14 = arith.constant 0 : index
    %c0_15 = arith.constant 0 : index
    %c0_16 = arith.constant 0 : index
    %6 = vector.load %arg1[%c0_13, %c2, %c0_14, %c0_15, %c0_16] : memref<1x4x9x17x3xf32, #tpu.memory_space<vmem>>, vector<1x1x8x16x3xf32>
    %7 = vector.shape_cast %6 : vector<1x1x8x16x3xf32> to vector<8x16x3xf32>
    %c0_17 = arith.constant 0 : index
    %c3 = arith.constant 3 : index
    %c0_18 = arith.constant 0 : index
    %c0_19 = arith.constant 0 : index
    %c0_20 = arith.constant 0 : index
    %8 = vector.load %arg1[%c0_17, %c3, %c0_18, %c0_19, %c0_20] : memref<1x4x9x17x3xf32, #tpu.memory_space<vmem>>, vector<1x1x8x16x3xf32>
    %9 = vector.shape_cast %8 : vector<1x1x8x16x3xf32> to vector<8x16x3xf32>
    %c0_21 = arith.constant 0 : index
    %c2_22 = arith.constant 2 : index
    %c0_23 = arith.constant 0 : index
    %c1_24 = arith.constant 1 : index
    %c0_25 = arith.constant 0 : index
    %10 = vector.load %arg1[%c0_21, %c2_22, %c0_23, %c1_24, %c0_25] : memref<1x4x9x17x3xf32, #tpu.memory_space<vmem>>, vector<1x1x8x16x3xf32>
    %11 = vector.shape_cast %10 : vector<1x1x8x16x3xf32> to vector<8x16x3xf32>
    %c0_26 = arith.constant 0 : index
    %c0_27 = arith.constant 0 : index
    %c1_28 = arith.constant 1 : index
    %c0_29 = arith.constant 0 : index
    %c0_30 = arith.constant 0 : index
    %12 = vector.load %arg1[%c0_26, %c0_27, %c1_28, %c0_29, %c0_30] : memref<1x4x9x17x3xf32, #tpu.memory_space<vmem>>, vector<1x1x8x16x3xf32>
    %13 = vector.shape_cast %12 : vector<1x1x8x16x3xf32> to vector<8x16x3xf32>
    %c0_31 = arith.constant 0 : index
    %c1_32 = arith.constant 1 : index
    %c1_33 = arith.constant 1 : index
    %c0_34 = arith.constant 0 : index
    %c0_35 = arith.constant 0 : index
    %14 = vector.load %arg1[%c0_31, %c1_32, %c1_33, %c0_34, %c0_35] : memref<1x4x9x17x3xf32, #tpu.memory_space<vmem>>, vector<1x1x8x16x3xf32>
    %15 = vector.shape_cast %14 : vector<1x1x8x16x3xf32> to vector<8x16x3xf32>
    %c0_36 = arith.constant 0 : index
    %c0_37 = arith.constant 0 : index
    %c1_38 = arith.constant 1 : index
    %c1_39 = arith.constant 1 : index
    %c0_40 = arith.constant 0 : index
    %16 = vector.load %arg1[%c0_36, %c0_37, %c1_38, %c1_39, %c0_40] : memref<1x4x9x17x3xf32, #tpu.memory_space<vmem>>, vector<1x1x8x16x3xf32>
    %17 = vector.shape_cast %16 : vector<1x1x8x16x3xf32> to vector<8x16x3xf32>
    %cst = arith.constant 0.000000e+00 : f32
    %18 = vector.broadcast %cst : f32 to vector<8x16x5xf32>
    %19 = tpu.concatenate %1, %3, %5, %7, %9, %11, %13, %15, %17, %18 in 2 : vector<8x16x3xf32>, vector<8x16x3xf32>, vector<8x16x3xf32>, vector<8x16x3xf32>, vector<8x16x3xf32>, vector<8x16x3xf32>, vector<8x16x3xf32>, vector<8x16x3xf32>, vector<8x16x3xf32>, vector<8x16x5xf32> -> vector<8x16x32xf32>
    %20 = vector.shape_cast %19 : vector<8x16x32xf32> to vector<128x32xf32>
    %c0_41 = arith.constant 0 : index
    %c0_42 = arith.constant 0 : index
    %21 = vector.load %arg2[%c0_41, %c0_42] : memref<32x16xf32, #tpu.memory_space<vmem>>, vector<32x16xf32>
    %cst_43 = arith.constant dense<0.000000e+00> : vector<128x16xf32>
    %22 = tpu.matmul %20, %21, %cst_43 {dimension_numbers = #tpu.dot_dimension_numbers<[1], [0], [0], [1], [0, 0, 1, 1], [], []>} : vector<128x32xf32>, vector<32x16xf32>, vector<128x16xf32> -> vector<128x16xf32>
    %c0_44 = arith.constant 0 : index
    %c0_45 = arith.constant 0 : index
    %23 = vector.load %arg3[%c0_44, %c0_45] : memref<1x16xf32, #tpu.memory_space<vmem>>, vector<1x16xf32>
    %24 = vector.broadcast %23 : vector<1x16xf32> to vector<128x16xf32>
    %25 = arith.addf %22, %24 : vector<128x16xf32>
    %c0_46 = arith.constant 0 : index
    %c0_47 = arith.constant 0 : index
    %c0_48 = arith.constant 0 : index
    %26 = vector.load %arg4[%c0_46, %c0_47, %c0_48] : memref<1x128x16xf32, #tpu.memory_space<vmem>>, vector<1x128x16xf32>
    %27 = vector.shape_cast %26 : vector<1x128x16xf32> to vector<128x16xf32>
    %28 = vector.shape_cast %25 : vector<128x16xf32> to vector<1x128x16xf32>
    tpu.vector_store %arg4[%c0_46, %c0_47, %c0_48], %28 {strides = array<i32>} : memref<1x128x16xf32, #tpu.memory_space<vmem>>, vector<1x128x16xf32>,
    return
  }
  func.func @transform_0(%arg0: i32) -> (i32, i32, i32, i32, i32) {
    %c0_i32 = arith.constant 0 : i32
    %c0_i32_0 = arith.constant 0 : i32
    %c0_i32_1 = arith.constant 0 : i32
    %c0_i32_2 = arith.constant 0 : i32
    %c0_i32_3 = arith.constant 0 : i32
    return %arg0, %c0_i32, %c0_i32_0, %c0_i32_1, %c0_i32_2 : i32, i32, i32, i32, i32
  }
  func.func @transform_1(%arg0: i32) -> (i32, i32) {
    %c0_i32 = arith.constant 0 : i32
    %c0_i32_0 = arith.constant 0 : i32
    %c0_i32_1 = arith.constant 0 : i32
    return %c0_i32, %c0_i32_0 : i32, i32
  }
  func.func @transform_2(%arg0: i32) -> (i32, i32) {
    %c0_i32 = arith.constant 0 : i32
    %c0_i32_0 = arith.constant 0 : i32
    %c0_i32_1 = arith.constant 0 : i32
    return %c0_i32, %c0_i32_0 : i32, i32
  }
  func.func @transform_3(%arg0: i32) -> (i32, i32, i32) {
    %c0_i32 = arith.constant 0 : i32
    %c0_i32_0 = arith.constant 0 : i32
    %c0_i32_1 = arith.constant 0 : i32
    return %arg0, %c0_i32, %c0_i32_0 : i32, i32, i32
  }
}

module attributes {stable_mosaic.version = 11 : i64} {
  func.func @_conv3x3_s2_kernel(%arg0: i32, %arg1: memref<1x4x5x17x16xf32, #tpu.memory_space<vmem>>, %arg2: memref<144x32xf32, #tpu.memory_space<vmem>>, %arg3: memref<1x32xf32, #tpu.memory_space<vmem>>, %arg4: memref<1x64x32xf32, #tpu.memory_space<vmem>>) attributes {dimension_semantics = [#tpu.dimension_semantics<parallel>], iteration_bounds = array<i64: 2>, scalar_prefetch = 0 : i64, scratch_operands = 0 : i64, tpu.core_type = #tpu.core_type<tc>, window_params = [{transform_indices = @transform_0, window_bounds = array<i64: 1, 4, 5, 17, 16>}, {pipeline_mode = #tpu.pipeline_mode<synchronous>, transform_indices = @transform_1, window_bounds = array<i64: 144, 32>}, {pipeline_mode = #tpu.pipeline_mode<synchronous>, transform_indices = @transform_2, window_bounds = array<i64: 1, 32>}, {transform_indices = @transform_3, window_bounds = array<i64: 1, 64, 32>}]} {
    %c0 = arith.constant 0 : index
    %c0_0 = arith.constant 0 : index
    %c0_1 = arith.constant 0 : index
    %c0_2 = arith.constant 0 : index
    %c0_3 = arith.constant 0 : index
    %0 = vector.load %arg1[%c0, %c0_0, %c0_1, %c0_2, %c0_3] : memref<1x4x5x17x16xf32, #tpu.memory_space<vmem>>, vector<1x1x4x16x16xf32>
    %1 = vector.shape_cast %0 : vector<1x1x4x16x16xf32> to vector<4x16x16xf32>
    %c0_4 = arith.constant 0 : index
    %c1 = arith.constant 1 : index
    %c0_5 = arith.constant 0 : index
    %c0_6 = arith.constant 0 : index
    %c0_7 = arith.constant 0 : index
    %2 = vector.load %arg1[%c0_4, %c1, %c0_5, %c0_6, %c0_7] : memref<1x4x5x17x16xf32, #tpu.memory_space<vmem>>, vector<1x1x4x16x16xf32>
    %3 = vector.shape_cast %2 : vector<1x1x4x16x16xf32> to vector<4x16x16xf32>
    %c0_8 = arith.constant 0 : index
    %c0_9 = arith.constant 0 : index
    %c0_10 = arith.constant 0 : index
    %c1_11 = arith.constant 1 : index
    %c0_12 = arith.constant 0 : index
    %4 = vector.load %arg1[%c0_8, %c0_9, %c0_10, %c1_11, %c0_12] : memref<1x4x5x17x16xf32, #tpu.memory_space<vmem>>, vector<1x1x4x16x16xf32>
    %5 = vector.shape_cast %4 : vector<1x1x4x16x16xf32> to vector<4x16x16xf32>
    %c0_13 = arith.constant 0 : index
    %c2 = arith.constant 2 : index
    %c0_14 = arith.constant 0 : index
    %c0_15 = arith.constant 0 : index
    %c0_16 = arith.constant 0 : index
    %6 = vector.load %arg1[%c0_13, %c2, %c0_14, %c0_15, %c0_16] : memref<1x4x5x17x16xf32, #tpu.memory_space<vmem>>, vector<1x1x4x16x16xf32>
    %7 = vector.shape_cast %6 : vector<1x1x4x16x16xf32> to vector<4x16x16xf32>
    %c0_17 = arith.constant 0 : index
    %c3 = arith.constant 3 : index
    %c0_18 = arith.constant 0 : index
    %c0_19 = arith.constant 0 : index
    %c0_20 = arith.constant 0 : index
    %8 = vector.load %arg1[%c0_17, %c3, %c0_18, %c0_19, %c0_20] : memref<1x4x5x17x16xf32, #tpu.memory_space<vmem>>, vector<1x1x4x16x16xf32>
    %9 = vector.shape_cast %8 : vector<1x1x4x16x16xf32> to vector<4x16x16xf32>
    %c0_21 = arith.constant 0 : index
    %c2_22 = arith.constant 2 : index
    %c0_23 = arith.constant 0 : index
    %c1_24 = arith.constant 1 : index
    %c0_25 = arith.constant 0 : index
    %10 = vector.load %arg1[%c0_21, %c2_22, %c0_23, %c1_24, %c0_25] : memref<1x4x5x17x16xf32, #tpu.memory_space<vmem>>, vector<1x1x4x16x16xf32>
    %11 = vector.shape_cast %10 : vector<1x1x4x16x16xf32> to vector<4x16x16xf32>
    %c0_26 = arith.constant 0 : index
    %c0_27 = arith.constant 0 : index
    %c1_28 = arith.constant 1 : index
    %c0_29 = arith.constant 0 : index
    %c0_30 = arith.constant 0 : index
    %12 = vector.load %arg1[%c0_26, %c0_27, %c1_28, %c0_29, %c0_30] : memref<1x4x5x17x16xf32, #tpu.memory_space<vmem>>, vector<1x1x4x16x16xf32>
    %13 = vector.shape_cast %12 : vector<1x1x4x16x16xf32> to vector<4x16x16xf32>
    %c0_31 = arith.constant 0 : index
    %c1_32 = arith.constant 1 : index
    %c1_33 = arith.constant 1 : index
    %c0_34 = arith.constant 0 : index
    %c0_35 = arith.constant 0 : index
    %14 = vector.load %arg1[%c0_31, %c1_32, %c1_33, %c0_34, %c0_35] : memref<1x4x5x17x16xf32, #tpu.memory_space<vmem>>, vector<1x1x4x16x16xf32>
    %15 = vector.shape_cast %14 : vector<1x1x4x16x16xf32> to vector<4x16x16xf32>
    %c0_36 = arith.constant 0 : index
    %c0_37 = arith.constant 0 : index
    %c1_38 = arith.constant 1 : index
    %c1_39 = arith.constant 1 : index
    %c0_40 = arith.constant 0 : index
    %16 = vector.load %arg1[%c0_36, %c0_37, %c1_38, %c1_39, %c0_40] : memref<1x4x5x17x16xf32, #tpu.memory_space<vmem>>, vector<1x1x4x16x16xf32>
    %17 = vector.shape_cast %16 : vector<1x1x4x16x16xf32> to vector<4x16x16xf32>
    %18 = tpu.concatenate %1, %3, %5, %7, %9, %11, %13, %15, %17 in 2 : vector<4x16x16xf32>, vector<4x16x16xf32>, vector<4x16x16xf32>, vector<4x16x16xf32>, vector<4x16x16xf32>, vector<4x16x16xf32>, vector<4x16x16xf32>, vector<4x16x16xf32>, vector<4x16x16xf32> -> vector<4x16x144xf32>
    %19 = vector.shape_cast %18 : vector<4x16x144xf32> to vector<64x144xf32>
    %c0_41 = arith.constant 0 : index
    %c0_42 = arith.constant 0 : index
    %20 = vector.load %arg2[%c0_41, %c0_42] : memref<144x32xf32, #tpu.memory_space<vmem>>, vector<144x32xf32>
    %cst = arith.constant dense<0.000000e+00> : vector<64x32xf32>
    %21 = tpu.matmul %19, %20, %cst {dimension_numbers = #tpu.dot_dimension_numbers<[1], [0], [0], [1], [0, 0, 1, 1], [], []>} : vector<64x144xf32>, vector<144x32xf32>, vector<64x32xf32> -> vector<64x32xf32>
    %c0_43 = arith.constant 0 : index
    %c0_44 = arith.constant 0 : index
    %22 = vector.load %arg3[%c0_43, %c0_44] : memref<1x32xf32, #tpu.memory_space<vmem>>, vector<1x32xf32>
    %23 = vector.broadcast %22 : vector<1x32xf32> to vector<64x32xf32>
    %24 = arith.addf %21, %23 : vector<64x32xf32>
    %c0_45 = arith.constant 0 : index
    %c0_46 = arith.constant 0 : index
    %c0_47 = arith.constant 0 : index
    %25 = vector.load %arg4[%c0_45, %c0_46, %c0_47] : memref<1x64x32xf32, #tpu.memory_space<vmem>>, vector<1x64x32xf32>
    %26 = vector.shape_cast %25 : vector<1x64x32xf32> to vector<64x32xf32>
    %27 = vector.shape_cast %24 : vector<64x32xf32> to vector<1x64x32xf32>
    tpu.vector_store %arg4[%c0_45, %c0_46, %c0_47], %27 {strides = array<i32>} : memref<1x64x32xf32, #tpu.memory_space<vmem>>, vector<1x64x32xf32>,
    return
  }
  func.func @transform_0(%arg0: i32) -> (i32, i32, i32, i32, i32) {
    %c0_i32 = arith.constant 0 : i32
    %c0_i32_0 = arith.constant 0 : i32
    %c0_i32_1 = arith.constant 0 : i32
    %c0_i32_2 = arith.constant 0 : i32
    %c0_i32_3 = arith.constant 0 : i32
    return %arg0, %c0_i32, %c0_i32_0, %c0_i32_1, %c0_i32_2 : i32, i32, i32, i32, i32
  }
  func.func @transform_1(%arg0: i32) -> (i32, i32) {
    %c0_i32 = arith.constant 0 : i32
    %c0_i32_0 = arith.constant 0 : i32
    %c0_i32_1 = arith.constant 0 : i32
    return %c0_i32, %c0_i32_0 : i32, i32
  }
  func.func @transform_2(%arg0: i32) -> (i32, i32) {
    %c0_i32 = arith.constant 0 : i32
    %c0_i32_0 = arith.constant 0 : i32
    %c0_i32_1 = arith.constant 0 : i32
    return %c0_i32, %c0_i32_0 : i32, i32
  }
  func.func @transform_3(%arg0: i32) -> (i32, i32, i32) {
    %c0_i32 = arith.constant 0 : i32
    %c0_i32_0 = arith.constant 0 : i32
    %c0_i32_1 = arith.constant 0 : i32
    return %arg0, %c0_i32, %c0_i32_0 : i32, i32, i32
  }
}

</mosaic_0001>

<llo_original>
// kernel: conv_tokenizer.2
$region0: #{conv_tokenizer.2}
  #allocation0 [shape = 'u32[]', space=smem, size = 0x4, offset = 0x4, fixed_abs, tag = 'smem constant byte address 0x4 - core index']
  #allocation1 [shape = 'u32[144,128]{1,0:T(1,128)}', space=vmem, size = 0x12000, scoped, tag = 'internal scratch']
  %s0 = inlined_call_operand.vmem [shape: f32[2,4,9,17,3], index: 0, kind: input, shape index: {}]
  %s1 = inlined_call_operand.vmem [shape: f32[32,16], index: 1, kind: input, shape index: {}]
  %s2 = inlined_call_operand.vmem [shape: f32[1,16], index: 2, kind: input, shape index: {}]
  %s3 = inlined_call_operand.vmem [shape: f32[2,128,16], index: 3, kind: output, shape index: {}]
  %s4 = sld [smem:[#allocation0]]
  $region45: #{conv_tokenizer.2} parent=0
    _
  %s6 = ssub.s32 1, %s4
  %s7 = scalar_select 0, %s6, %s4
  loop: start=0, step=1, limit=4
  $region2: #{conv_tokenizer.2} parent=0 // loop_pre_header
    _
  $region3: #{conv_tokenizer.2} parent=0 // loop_header
    %s9 = sphi 0, %s13
    %p10 = scmp.ge.s32.totalorder %s9, 4
    %s19 = sphi 0, %s21
    %s22 = sphi 0, %s19
    %s23 = sphi 0, %s22
    %s39 = sphi 0, %s23
    %s43 = sphi 0, %s43
    %s45 = sphi 0, %s43
    %s46 = sphi 0, %s45
    %s60 = sphi 0, %s46
    %s64 = sphi 0, %s64
    %s66 = sphi 0, %s64
    %s67 = sphi 0, %s66
    %s81 = sphi 0, %s67
    %s87 = sphi 0, %s89
    %s90 = sphi 0, %s87
    %s91 = sphi 0, %s90
    %s107 = sphi 0, %s91
  $region4: #{conv_tokenizer.2} parent=0 // loop_header_branch
    %12 = sbr.rel (%p10) target = $region8
  $region5: #{conv_tokenizer.2} parent=0 // loop_body
    %s14 = ssub.s32 %s9, 1
    %s15 = ssub.s32 %s9, 2
    %s16 = sadd.s32 %s9, 1
    %s17 = ssub.s32 %s9, %s16
    %p18 = scmp.eq.s32.totalorder %s17, 0
    %s20 = sadd.s32 %s19, 1
    %s21 = scalar_select %p18, %s19, %s20
    %p24 = pneg %p18
    %p25 = scmp.eq.s32.totalorder %s9, 1
    %p26 = por %p24, %p25
    %p27 = scmp.ne.s32.totalorder %s19, %s22
    %p28 = scmp.eq.s32.totalorder %s9, 0
    %p29 = por %p27, %p28
    %p30 = scmp.ne.s32.totalorder %s19, %s22
    %p31 = scmp.eq.s32.totalorder %s14, 1
    %p32 = por %p30, %p31
    %p33 = scmp.ne.s32.totalorder %s22, %s23
    %p34 = scmp.eq.s32.totalorder %s14, 0
    %p35 = por %p33, %p34
    %p36 = scmp.ne.s32.totalorder %s22, %s23
    %p37 = scmp.eq.s32.totalorder %s15, 1
    %p38 = por %p36, %p37
    %p40 = scmp.ne.s32.totalorder %s23, %s39
    %p41 = scmp.eq.s32.totalorder %s15, 0
    %p42 = por %p40, %p41
    %s44 = sadd.s32 %s43, 1
    %p47 = scmp.eq.s32.totalorder %s9, 1
    %p48 = scmp.ne.s32.totalorder %s43, %s45
    %p49 = scmp.eq.s32.totalorder %s9, 0
    %p50 = por %p48, %p49
    %p51 = scmp.ne.s32.totalorder %s43, %s45
    %p52 = scmp.eq.s32.totalorder %s14, 1
    %p53 = por %p51, %p52
    %p54 = scmp.ne.s32.totalorder %s45, %s46
    %p55 = scmp.eq.s32.totalorder %s14, 0
    %p56 = por %p54, %p55
    %p57 = scmp.ne.s32.totalorder %s45, %s46
    %p58 = scmp.eq.s32.totalorder %s15, 1
    %p59 = por %p57, %p58
    %p61 = scmp.ne.s32.totalorder %s46, %s60
    %p62 = scmp.eq.s32.totalorder %s15, 0
    %p63 = por %p61, %p62
    %s65 = sadd.s32 %s64, 1
    %p68 = scmp.eq.s32.totalorder %s9, 1
    %p69 = scmp.ne.s32.totalorder %s64, %s66
    %p70 = scmp.eq.s32.totalorder %s9, 0
    %p71 = por %p69, %p70
    %p72 = scmp.ne.s32.totalorder %s64, %s66
    %p73 = scmp.eq.s32.totalorder %s14, 1
    %p74 = por %p72, %p73
    %p75 = scmp.ne.s32.totalorder %s66, %s67
    %p76 = scmp.eq.s32.totalorder %s14, 0
    %p77 = por %p75, %p76
    %p78 = scmp.ne.s32.totalorder %s66, %s67
    %p79 = scmp.eq.s32.totalorder %s15, 1
    %p80 = por %p78, %p79
    %p82 = scmp.ne.s32.totalorder %s67, %s81
    %p83 = scmp.eq.s32.totalorder %s15, 0
    %p84 = por %p82, %p83
    %s85 = ssub.s32 %s9, %s16
    %p86 = scmp.eq.s32.totalorder %s85, 0
    %s88 = sadd.s32 %s87, 1
    %s89 = scalar_select %p86, %s87, %s88
    %p92 = pneg %p86
    %p93 = scmp.eq.s32.totalorder %s9, 1
    %p94 = por %p92, %p93
    %p95 = scmp.ne.s32.totalorder %s87, %s90
    %p96 = scmp.eq.s32.totalorder %s9, 0
    %p97 = por %p95, %p96
    %p98 = scmp.ne.s32.totalorder %s87, %s90
    %p99 = scmp.eq.s32.totalorder %s14, 1
    %p100 = por %p98, %p99
    %p101 = scmp.ne.s32.totalorder %s90, %s91
    %p102 = scmp.eq.s32.totalorder %s14, 0
    %p103 = por %p101, %p102
    %p104 = scmp.ne.s32.totalorder %s90, %s91
    %p105 = scmp.eq.s32.totalorder %s15, 1
    %p106 = por %p104, %p105
    %p108 = scmp.ne.s32.totalorder %s91, %s107
    %p109 = scmp.eq.s32.totalorder %s15, 0
    %p110 = por %p108, %p109
    %p111 = scmp.le.s32.totalorder 1, %s9
    %p112 = scmp.lt.s32.totalorder %s9, 3
    %p113 = pnand %p111, %p112
    %p114 = pneg %p113
    // Predicated region
    $region9: #{conv_tokenizer.2} parent=5 // pred_check
      _
    $region10: #{conv_tokenizer.2} parent=5 // pred_check_branch
      %116 = sbr.rel (%p113) target = $region12
    $region11: #{conv_tokenizer.2} parent=5 // pred_region
      %s117 = ssub.s32 %s9, 1
      // Predicated region
      $region13: #{conv_tokenizer.2} parent=11 // pred_check
        %p118 = pneg %p56
      $region14: #{conv_tokenizer.2} parent=11 // pred_check_branch
        %120 = sbr.rel (%p118) target = $region16
      $region15: #{conv_tokenizer.2} parent=11 // pred_region
        _
      $region16: #{conv_tokenizer.2} parent=11 // pred_fallthru
        _
      // Predicated region
      $region17: #{conv_tokenizer.2} parent=11 // pred_check
        %p121 = pneg %p77
      $region18: #{conv_tokenizer.2} parent=11 // pred_check_branch
        %123 = sbr.rel (%p121) target = $region20
      $region19: #{conv_tokenizer.2} parent=11 // pred_region
        _
      $region20: #{conv_tokenizer.2} parent=11 // pred_fallthru
        _
    $region12: #{conv_tokenizer.2} parent=5 // pred_fallthru
      _
    %p124 = scmp.lt.s32.totalorder %s9, 2
    // Predicated region
    $region21: #{conv_tokenizer.2} parent=5 // pred_check
      %p125 = pneg %p124
    $region22: #{conv_tokenizer.2} parent=5 // pred_check_branch
      %127 = sbr.rel (%p125) target = $region24
    $region23: #{conv_tokenizer.2} parent=5 // pred_region
      // Predicated region
      $region25: #{conv_tokenizer.2} parent=23 // pred_check
        %p128 = pneg %p29
      $region26: #{conv_tokenizer.2} parent=23 // pred_check_branch
        %130 = sbr.rel (%p128) target = $region28
      $region27: #{conv_tokenizer.2} parent=23 // pred_region
        %p131 = scmp.lt.s32.totalorder %s9, 1
        %s132 = scalar_select %p131, %s9, 1
        %s133 = smul.addr %s132, 108
        %s134 = smul.addr %s133, 8
        %s135 = scalar_lea.vmem %s0, %s134
      $region28: #{conv_tokenizer.2} parent=23 // pred_fallthru
        _
    $region24: #{conv_tokenizer.2} parent=5 // pred_fallthru
      _
    %p136 = scmp.le.s32.totalorder 1, %s9
    %p137 = scmp.lt.s32.totalorder %s9, 3
    %p138 = pnand %p136, %p137
    %p139 = pneg %p138
    // Predicated region
    $region29: #{conv_tokenizer.2} parent=5 // pred_check
      _
    $region30: #{conv_tokenizer.2} parent=5 // pred_check_branch
      %141 = sbr.rel (%p138) target = $region32
    $region31: #{conv_tokenizer.2} parent=5 // pred_region
      %s142 = ssub.s32 %s9, 1
      %p143 = scmp.lt.s32.totalorder %s14, 1
      %s144 = scalar_select %p143, %s14, 1
      %s145 = smul.addr %s144, 108
      %s146 = smul.addr %s145, 8
      %s147 = scalar_lea.vmem %s0, %s146
      %p148 = pneg %p35
      %p149 = pneg %p32
      %p150 = pneg %p56
      %p151 = pneg %p53
      %p152 = pneg %p77
      %p153 = pneg %p74
      %p154 = pneg %p103
      %p155 = pneg %p100
      %p156 = scmp.lt.s32.totalorder %s14, 1
      %s157 = scalar_select %p156, %s14, 1
      %s158 = smul.addr %s157, 16
      %s159 = smul.addr %s158, 8
      %s160 = scalar_lea.vmem %s3, %s159
      %p161 = scmp.lt.s32.totalorder %s14, 1
      %s162 = scalar_select %p161, %s14, 1
      %s163 = smul.addr %s162, 108
      %s164 = smul.addr %s163, 8
      %s165 = scalar_lea.vmem %s0, %s164
      %p166 = scmp.lt.s32.totalorder %s14, 1
      %s167 = scalar_select %p166, %s14, 1
      %s168 = smul.addr %s167, 16
      %s169 = smul.addr %s168, 8
      %s170 = scalar_lea.vmem %s3, %s169
      %v171 = vld [vmem:[%s165] sm:$0xff]
      %v172 = vld [vmem:[%s165 + $0x8] sm:$0xff]
      %v173 = vld [vmem:[%s165 + $0x18] sm:$0xff]
      %v174 = vld [vmem:[%s165 + $0x20] sm:$0xff]
      %v175 = vld [vmem:[%s165 + $0x30] sm:$0xff]
      %v176 = vld [vmem:[%s165 + $0x38] sm:$0xff]
      %v177 = vld [vmem:[%s165 + $0x48] sm:$0xff]
      %v178 = vld [vmem:[%s165 + $0x50] sm:$0xff]
      %v179 = vld [vmem:[%s165 + $0x60] sm:$0xff]
      %v180 = vld [vmem:[%s165 + $0x68] sm:$0xff]
      %v181 = vld [vmem:[%s165 + $0x78] sm:$0xff]
      %v182 = vld [vmem:[%s165 + $0x80] sm:$0xff]
      %v183 = vld [vmem:[%s165 + $0x90] sm:$0xff]
      %v184 = vld [vmem:[%s165 + $0x98] sm:$0xff]
      %v185 = vld [vmem:[%s165 + $0xa8] sm:$0xff]
      %v186 = vld [vmem:[%s165 + $0xb0] sm:$0xff]
      %s187 = scalar_lea.vmem %s165, 216
      %v188 = vld [vmem:[%s187] sm:$0xff]
      %v189 = vld [vmem:[%s187 + $0x8] sm:$0xff]
      %v190 = vld [vmem:[%s187 + $0x18] sm:$0xff]
      %v191 = vld [vmem:[%s187 + $0x20] sm:$0xff]
      %v192 = vld [vmem:[%s187 + $0x30] sm:$0xff]
      %v193 = vld [vmem:[%s187 + $0x38] sm:$0xff]
      %v194 = vld [vmem:[%s187 + $0x48] sm:$0xff]
      %v195 = vld [vmem:[%s187 + $0x50] sm:$0xff]
      %v196 = vld [vmem:[%s187 + $0x60] sm:$0xff]
      %v197 = vld [vmem:[%s187 + $0x68] sm:$0xff]
      %v198 = vld [vmem:[%s187 + $0x78] sm:$0xff]
      %v199 = vld [vmem:[%s187 + $0x80] sm:$0xff]
      %v200 = vld [vmem:[%s187 + $0x90] sm:$0xff]
      %v201 = vld [vmem:[%s187 + $0x98] sm:$0xff]
      %v202 = vld [vmem:[%s187 + $0xa8] sm:$0xff]
      %v203 = vld [vmem:[%s187 + $0xb0] sm:$0xff]
      %v204 = vld [vmem:[%s165 + $0x1] sm:$0xff]
      %v205 = vld [vmem:[%s165 + $0x9] sm:$0xff]
      %v206 = vld [vmem:[%s165 + $0x19] sm:$0xff]
      %v207 = vld [vmem:[%s165 + $0x21] sm:$0xff]
      %v208 = vld [vmem:[%s165 + $0x31] sm:$0xff]
      %v209 = vld [vmem:[%s165 + $0x39] sm:$0xff]
      %v210 = vld [vmem:[%s165 + $0x49] sm:$0xff]
      %v211 = vld [vmem:[%s165 + $0x51] sm:$0xff]
      %v212 = vld [vmem:[%s165 + $0x61] sm:$0xff]
      %v213 = vld [vmem:[%s165 + $0x69] sm:$0xff]
      %v214 = vld [vmem:[%s165 + $0x79] sm:$0xff]
      %v215 = vld [vmem:[%s165 + $0x81] sm:$0xff]
      %v216 = vld [vmem:[%s165 + $0x91] sm:$0xff]
      %v217 = vld [vmem:[%s165 + $0x99] sm:$0xff]
      %v218 = vld [vmem:[%s165 + $0xa9] sm:$0xff]
      %v219 = vld [vmem:[%s165 + $0xb1] sm:$0xff]
      %s220 = scalar_lea.vmem %s165, 432
      %v221 = vld [vmem:[%s220] sm:$0xff]
      %v222 = vld [vmem:[%s220 + $0x8] sm:$0xff]
      %v223 = vld [vmem:[%s220 + $0x18] sm:$0xff]
      %v224 = vld [vmem:[%s220 + $0x20] sm:$0xff]
      %v225 = vld [vmem:[%s220 + $0x30] sm:$0xff]
      %v226 = vld [vmem:[%s220 + $0x38] sm:$0xff]
      %v227 = vld [vmem:[%s220 + $0x48] sm:$0xff]
      %v228 = vld [vmem:[%s220 + $0x50] sm:$0xff]
      %v229 = vld [vmem:[%s220 + $0x60] sm:$0xff]
      %v230 = vld [vmem:[%s220 + $0x68] sm:$0xff]
      %v231 = vld [vmem:[%s220 + $0x78] sm:$0xff]
      %v232 = vld [vmem:[%s220 + $0x80] sm:$0xff]
      %v233 = vld [vmem:[%s220 + $0x90] sm:$0xff]
      %v234 = vld [vmem:[%s220 + $0x98] sm:$0xff]
      %v235 = vld [vmem:[%s220 + $0xa8] sm:$0xff]
      %v236 = vld [vmem:[%s220 + $0xb0] sm:$0xff]
      %s237 = scalar_lea.vmem %s165, 648
      %v238 = vld [vmem:[%s237] sm:$0xff]
      %v239 = vld [vmem:[%s237 + $0x8] sm:$0xff]
      %v240 = vld [vmem:[%s237 + $0x18] sm:$0xff]
      %v241 = vld [vmem:[%s237 + $0x20] sm:$0xff]
      %v242 = vld [vmem:[%s237 + $0x30] sm:$0xff]
      %v243 = vld [vmem:[%s237 + $0x38] sm:$0xff]
      %v244 = vld [vmem:[%s237 + $0x48] sm:$0xff]
      %v245 = vld [vmem:[%s237 + $0x50] sm:$0xff]
      %v246 = vld [vmem:[%s237 + $0x60] sm:$0xff]
      %v247 = vld [vmem:[%s237 + $0x68] sm:$0xff]
      %v248 = vld [vmem:[%s237 + $0x78] sm:$0xff]
      %v249 = vld [vmem:[%s237 + $0x80] sm:$0xff]
      %v250 = vld [vmem:[%s237 + $0x90] sm:$0xff]
      %v251 = vld [vmem:[%s237 + $0x98] sm:$0xff]
      %v252 = vld [vmem:[%s237 + $0xa8] sm:$0xff]
      %v253 = vld [vmem:[%s237 + $0xb0] sm:$0xff]
      %v254 = vld [vmem:[%s220 + $0x1] sm:$0xff]
      %v255 = vld [vmem:[%s220 + $0x9] sm:$0xff]
      %v256 = vld [vmem:[%s220 + $0x19] sm:$0xff]
      %v257 = vld [vmem:[%s220 + $0x21] sm:$0xff]
      %v258 = vld [vmem:[%s220 + $0x31] sm:$0xff]
      %v259 = vld [vmem:[%s220 + $0x39] sm:$0xff]
      %v260 = vld [vmem:[%s220 + $0x49] sm:$0xff]
      %v261 = vld [vmem:[%s220 + $0x51] sm:$0xff]
      %v262 = vld [vmem:[%s220 + $0x61] sm:$0xff]
      %v263 = vld [vmem:[%s220 + $0x69] sm:$0xff]
      %v264 = vld [vmem:[%s220 + $0x79] sm:$0xff]
      %v265 = vld [vmem:[%s220 + $0x81] sm:$0xff]
      %v266 = vld [vmem:[%s220 + $0x91] sm:$0xff]
      %v267 = vld [vmem:[%s220 + $0x99] sm:$0xff]
      %v268 = vld [vmem:[%s220 + $0xa9] sm:$0xff]
      %v269 = vld [vmem:[%s220 + $0xb1] sm:$0xff]
      %s270 = scalar_lea.vmem %s165, 24
      %v271 = vld [vmem:[%s270] sm:$0xff]
      %v272 = vld [vmem:[%s270 + $0x8] sm:$0xff]
      %v273 = vld [vmem:[%s270 + $0x18] sm:$0xff]
      %v274 = vld [vmem:[%s270 + $0x20] sm:$0xff]
      %v275 = vld [vmem:[%s270 + $0x30] sm:$0xff]
      %v276 = vld [vmem:[%s270 + $0x38] sm:$0xff]
      %v277 = vld [vmem:[%s270 + $0x48] sm:$0xff]
      %v278 = vld [vmem:[%s270 + $0x50] sm:$0xff]
      %v279 = vld [vmem:[%s270 + $0x60] sm:$0xff]
      %v280 = vld [vmem:[%s270 + $0x68] sm:$0xff]
      %v281 = vld [vmem:[%s270 + $0x78] sm:$0xff]
      %v282 = vld [vmem:[%s270 + $0x80] sm:$0xff]
      %v283 = vld [vmem:[%s270 + $0x90] sm:$0xff]
      %v284 = vld [vmem:[%s270 + $0x98] sm:$0xff]
      %v285 = vld [vmem:[%s270 + $0xa8] sm:$0xff]
      %v286 = vld [vmem:[%s270 + $0xb0] sm:$0xff]
      %s287 = scalar_lea.vmem %s165, 240
      %v288 = vld [vmem:[%s287] sm:$0xff]
      %v289 = vld [vmem:[%s287 + $0x8] sm:$0xff]
      %v290 = vld [vmem:[%s287 + $0x18] sm:$0xff]
      %v291 = vld [vmem:[%s287 + $0x20] sm:$0xff]
      %v292 = vld [vmem:[%s287 + $0x30] sm:$0xff]
      %v293 = vld [vmem:[%s287 + $0x38] sm:$0xff]
      %v294 = vld [vmem:[%s287 + $0x48] sm:$0xff]
      %v295 = vld [vmem:[%s287 + $0x50] sm:$0xff]
      %v296 = vld [vmem:[%s287 + $0x60] sm:$0xff]
      %v297 = vld [vmem:[%s287 + $0x68] sm:$0xff]
      %v298 = vld [vmem:[%s287 + $0x78] sm:$0xff]
      %v299 = vld [vmem:[%s287 + $0x80] sm:$0xff]
      %v300 = vld [vmem:[%s287 + $0x90] sm:$0xff]
      %v301 = vld [vmem:[%s287 + $0x98] sm:$0xff]
      %v302 = vld [vmem:[%s287 + $0xa8] sm:$0xff]
      %v303 = vld [vmem:[%s287 + $0xb0] sm:$0xff]
      %v304 = vld [vmem:[%s270 + $0x1] sm:$0xff]
      %v305 = vld [vmem:[%s270 + $0x9] sm:$0xff]
      %v306 = vld [vmem:[%s270 + $0x19] sm:$0xff]
      %v307 = vld [vmem:[%s270 + $0x21] sm:$0xff]
      %v308 = vld [vmem:[%s270 + $0x31] sm:$0xff]
      %v309 = vld [vmem:[%s270 + $0x39] sm:$0xff]
      %v310 = vld [vmem:[%s270 + $0x49] sm:$0xff]
      %v311 = vld [vmem:[%s270 + $0x51] sm:$0xff]
      %v312 = vld [vmem:[%s270 + $0x61] sm:$0xff]
      %v313 = vld [vmem:[%s270 + $0x69] sm:$0xff]
      %v314 = vld [vmem:[%s270 + $0x79] sm:$0xff]
      %v315 = vld [vmem:[%s270 + $0x81] sm:$0xff]
      %v316 = vld [vmem:[%s270 + $0x91] sm:$0xff]
      %v317 = vld [vmem:[%s270 + $0x99] sm:$0xff]
      %v318 = vld [vmem:[%s270 + $0xa9] sm:$0xff]
      %v319 = vld [vmem:[%s270 + $0xb1] sm:$0xff]
      %336 = vrot.lane.b32.xlu0 %v188, 3
      %v337 = vpop.permute.xlu0 %336
      %338 = vrot.lane.b32.xlu0 %v189, 3
      %v339 = vpop.permute.xlu0 %338
      %340 = vrot.lane.b32.xlu0 %v190, 3
      %v341 = vpop.permute.xlu0 %340
      %342 = vrot.lane.b32.xlu0 %v191, 3
      %v343 = vpop.permute.xlu0 %342
      %344 = vrot.lane.b32.xlu0 %v192, 3
      %v345 = vpop.permute.xlu0 %344
      %346 = vrot.lane.b32.xlu0 %v193, 3
      %v347 = vpop.permute.xlu0 %346
      %348 = vrot.lane.b32.xlu0 %v194, 3
      %v349 = vpop.permute.xlu0 %348
      %350 = vrot.lane.b32.xlu0 %v195, 3
      %v351 = vpop.permute.xlu0 %350
      %352 = vrot.lane.b32.xlu0 %v196, 3
      %v353 = vpop.permute.xlu0 %352
      %354 = vrot.lane.b32.xlu0 %v197, 3
      %v355 = vpop.permute.xlu0 %354
      %356 = vrot.lane.b32.xlu0 %v198, 3
      %v357 = vpop.permute.xlu0 %356
      %358 = vrot.lane.b32.xlu0 %v199, 3
      %v359 = vpop.permute.xlu0 %358
      %360 = vrot.lane.b32.xlu0 %v200, 3
      %v361 = vpop.permute.xlu0 %360
      %362 = vrot.lane.b32.xlu0 %v201, 3
      %v363 = vpop.permute.xlu0 %362
      %364 = vrot.lane.b32.xlu0 %v202, 3
      %v365 = vpop.permute.xlu0 %364
      %366 = vrot.lane.b32.xlu0 %v203, 3
      %v367 = vpop.permute.xlu0 %366
      %400 = vrot.lane.b32.xlu0 %v204, 6
      %v401 = vpop.permute.xlu0 %400
      %402 = vrot.lane.b32.xlu0 %v205, 6
      %v403 = vpop.permute.xlu0 %402
      %404 = vrot.lane.b32.xlu0 %v206, 6
      %v405 = vpop.permute.xlu0 %404
      %406 = vrot.lane.b32.xlu0 %v207, 6
      %v407 = vpop.permute.xlu0 %406
      %408 = vrot.lane.b32.xlu0 %v208, 6
      %v409 = vpop.permute.xlu0 %408
      %410 = vrot.lane.b32.xlu0 %v209, 6
      %v411 = vpop.permute.xlu0 %410
      %412 = vrot.lane.b32.xlu0 %v210, 6
      %v413 = vpop.permute.xlu0 %412
      %414 = vrot.lane.b32.xlu0 %v211, 6
      %v415 = vpop.permute.xlu0 %414
      %416 = vrot.lane.b32.xlu0 %v212, 6
      %v417 = vpop.permute.xlu0 %416
      %418 = vrot.lane.b32.xlu0 %v213, 6
      %v419 = vpop.permute.xlu0 %418
      %420 = vrot.lane.b32.xlu0 %v214, 6
      %v421 = vpop.permute.xlu0 %420
      %422 = vrot.lane.b32.xlu0 %v215, 6
      %v423 = vpop.permute.xlu0 %422
      %424 = vrot.lane.b32.xlu0 %v216, 6
      %v425 = vpop.permute.xlu0 %424
      %426 = vrot.lane.b32.xlu0 %v217, 6
      %v427 = vpop.permute.xlu0 %426
      %428 = vrot.lane.b32.xlu0 %v218, 6
      %v429 = vpop.permute.xlu0 %428
      %430 = vrot.lane.b32.xlu0 %v219, 6
      %v431 = vpop.permute.xlu0 %430
      %464 = vrot.lane.b32.xlu0 %v221, 9
      %v465 = vpop.permute.xlu0 %464
      %466 = vrot.lane.b32.xlu0 %v222, 9
      %v467 = vpop.permute.xlu0 %466
      %468 = vrot.lane.b32.xlu0 %v223, 9
      %v469 = vpop.permute.xlu0 %468
      %470 = vrot.lane.b32.xlu0 %v224, 9
      %v471 = vpop.permute.xlu0 %470
      %472 = vrot.lane.b32.xlu0 %v225, 9
      %v473 = vpop.permute.xlu0 %472
      %474 = vrot.lane.b32.xlu0 %v226, 9
      %v475 = vpop.permute.xlu0 %474
      %476 = vrot.lane.b32.xlu0 %v227, 9
      %v477 = vpop.permute.xlu0 %476
      %478 = vrot.lane.b32.xlu0 %v228, 9
      %v479 = vpop.permute.xlu0 %478
      %480 = vrot.lane.b32.xlu0 %v229, 9
      %v481 = vpop.permute.xlu0 %480
      %482 = vrot.lane.b32.xlu0 %v230, 9
      %v483 = vpop.permute.xlu0 %482
      %484 = vrot.lane.b32.xlu0 %v231, 9
      %v485 = vpop.permute.xlu0 %484
      %486 = vrot.lane.b32.xlu0 %v232, 9
      %v487 = vpop.permute.xlu0 %486
      %488 = vrot.lane.b32.xlu0 %v233, 9
      %v489 = vpop.permute.xlu0 %488
      %490 = vrot.lane.b32.xlu0 %v234, 9
      %v491 = vpop.permute.xlu0 %490
      %492 = vrot.lane.b32.xlu0 %v235, 9
      %v493 = vpop.permute.xlu0 %492
      %494 = vrot.lane.b32.xlu0 %v236, 9
      %v495 = vpop.permute.xlu0 %494
      %528 = vrot.lane.b32.xlu0 %v238, 12
      %v529 = vpop.permute.xlu0 %528
      %530 = vrot.lane.b32.xlu0 %v239, 12
      %v531 = vpop.permute.xlu0 %530
      %532 = vrot.lane.b32.xlu0 %v240, 12
      %v533 = vpop.permute.xlu0 %532
      %534 = vrot.lane.b32.xlu0 %v241, 12
      %v535 = vpop.permute.xlu0 %534
      %536 = vrot.lane.b32.xlu0 %v242, 12
      %v537 = vpop.permute.xlu0 %536
      %538 = vrot.lane.b32.xlu0 %v243, 12
      %v539 = vpop.permute.xlu0 %538
      %540 = vrot.lane.b32.xlu0 %v244, 12
      %v541 = vpop.permute.xlu0 %540
      %542 = vrot.lane.b32.xlu0 %v245, 12
      %v543 = vpop.permute.xlu0 %542
      %544 = vrot.lane.b32.xlu0 %v246, 12
      %v545 = vpop.permute.xlu0 %544
      %546 = vrot.lane.b32.xlu0 %v247, 12
      %v547 = vpop.permute.xlu0 %546
      %548 = vrot.lane.b32.xlu0 %v248, 12
      %v549 = vpop.permute.xlu0 %548
      %550 = vrot.lane.b32.xlu0 %v249, 12
      %v551 = vpop.permute.xlu0 %550
      %552 = vrot.lane.b32.xlu0 %v250, 12
      %v553 = vpop.permute.xlu0 %552
      %554 = vrot.lane.b32.xlu0 %v251, 12
      %v555 = vpop.permute.xlu0 %554
      %556 = vrot.lane.b32.xlu0 %v252, 12
      %v557 = vpop.permute.xlu0 %556
      %558 = vrot.lane.b32.xlu0 %v253, 12
      %v559 = vpop.permute.xlu0 %558
      %592 = vrot.lane.b32.xlu0 %v254, 15
      %v593 = vpop.permute.xlu0 %592
      %594 = vrot.lane.b32.xlu0 %v255, 15
      %v595 = vpop.permute.xlu0 %594
      %596 = vrot.lane.b32.xlu0 %v256, 15
      %v597 = vpop.permute.xlu0 %596
      %598 = vrot.lane.b32.xlu0 %v257, 15
      %v599 = vpop.permute.xlu0 %598
      %600 = vrot.lane.b32.xlu0 %v258, 15
      %v601 = vpop.permute.xlu0 %600
      %602 = vrot.lane.b32.xlu0 %v259, 15
      %v603 = vpop.permute.xlu0 %602
      %604 = vrot.lane.b32.xlu0 %v260, 15
      %v605 = vpop.permute.xlu0 %604
      %606 = vrot.lane.b32.xlu0 %v261, 15
      %v607 = vpop.permute.xlu0 %606
      %608 = vrot.lane.b32.xlu0 %v262, 15
      %v609 = vpop.permute.xlu0 %608
      %610 = vrot.lane.b32.xlu0 %v263, 15
      %v611 = vpop.permute.xlu0 %610
      %612 = vrot.lane.b32.xlu0 %v264, 15
      %v613 = vpop.permute.xlu0 %612
      %614 = vrot.lane.b32.xlu0 %v265, 15
      %v615 = vpop.permute.xlu0 %614
      %616 = vrot.lane.b32.xlu0 %v266, 15
      %v617 = vpop.permute.xlu0 %616
      %618 = vrot.lane.b32.xlu0 %v267, 15
      %v619 = vpop.permute.xlu0 %618
      %620 = vrot.lane.b32.xlu0 %v268, 15
      %v621 = vpop.permute.xlu0 %620
      %622 = vrot.lane.b32.xlu0 %v269, 15
      %v623 = vpop.permute.xlu0 %622
      %656 = vrot.lane.b32.xlu0 %v271, 18
      %v657 = vpop.permute.xlu0 %656
      %658 = vrot.lane.b32.xlu0 %v272, 18
      %v659 = vpop.permute.xlu0 %658
      %660 = vrot.lane.b32.xlu0 %v273, 18
      %v661 = vpop.permute.xlu0 %660
      %662 = vrot.lane.b32.xlu0 %v274, 18
      %v663 = vpop.permute.xlu0 %662
      %664 = vrot.lane.b32.xlu0 %v275, 18
      %v665 = vpop.permute.xlu0 %664
      %666 = vrot.lane.b32.xlu0 %v276, 18
      %v667 = vpop.permute.xlu0 %666
      %668 = vrot.lane.b32.xlu0 %v277, 18
      %v669 = vpop.permute.xlu0 %668
      %670 = vrot.lane.b32.xlu0 %v278, 18
      %v671 = vpop.permute.xlu0 %670
      %672 = vrot.lane.b32.xlu0 %v279, 18
      %v673 = vpop.permute.xlu0 %672
      %674 = vrot.lane.b32.xlu0 %v280, 18
      %v675 = vpop.permute.xlu0 %674
      %676 = vrot.lane.b32.xlu0 %v281, 18
      %v677 = vpop.permute.xlu0 %676
      %678 = vrot.lane.b32.xlu0 %v282, 18
      %v679 = vpop.permute.xlu0 %678
      %680 = vrot.lane.b32.xlu0 %v283, 18
      %v681 = vpop.permute.xlu0 %680
      %682 = vrot.lane.b32.xlu0 %v284, 18
      %v683 = vpop.permute.xlu0 %682
      %684 = vrot.lane.b32.xlu0 %v285, 18
      %v685 = vpop.permute.xlu0 %684
      %686 = vrot.lane.b32.xlu0 %v286, 18
      %v687 = vpop.permute.xlu0 %686
      %720 = vrot.lane.b32.xlu0 %v288, 21
      %v721 = vpop.permute.xlu0 %720
      %722 = vrot.lane.b32.xlu0 %v289, 21
      %v723 = vpop.permute.xlu0 %722
      %724 = vrot.lane.b32.xlu0 %v290, 21
      %v725 = vpop.permute.xlu0 %724
      %726 = vrot.lane.b32.xlu0 %v291, 21
      %v727 = vpop.permute.xlu0 %726
      %728 = vrot.lane.b32.xlu0 %v292, 21
      %v729 = vpop.permute.xlu0 %728
      %730 = vrot.lane.b32.xlu0 %v293, 21
      %v731 = vpop.permute.xlu0 %730
      %732 = vrot.lane.b32.xlu0 %v294, 21
      %v733 = vpop.permute.xlu0 %732
      %734 = vrot.lane.b32.xlu0 %v295, 21
      %v735 = vpop.permute.xlu0 %734
      %736 = vrot.lane.b32.xlu0 %v296, 21
      %v737 = vpop.permute.xlu0 %736
      %738 = vrot.lane.b32.xlu0 %v297, 21
      %v739 = vpop.permute.xlu0 %738
      %740 = vrot.lane.b32.xlu0 %v298, 21
      %v741 = vpop.permute.xlu0 %740
      %742 = vrot.lane.b32.xlu0 %v299, 21
      %v743 = vpop.permute.xlu0 %742
      %744 = vrot.lane.b32.xlu0 %v300, 21
      %v745 = vpop.permute.xlu0 %744
      %746 = vrot.lane.b32.xlu0 %v301, 21
      %v747 = vpop.permute.xlu0 %746
      %748 = vrot.lane.b32.xlu0 %v302, 21
      %v749 = vpop.permute.xlu0 %748
      %750 = vrot.lane.b32.xlu0 %v303, 21
      %v751 = vpop.permute.xlu0 %750
      %784 = vrot.lane.b32.xlu0 %v304, 24
      %v785 = vpop.permute.xlu0 %784
      %786 = vrot.lane.b32.xlu0 %v305, 24
      %v787 = vpop.permute.xlu0 %786
      %788 = vrot.lane.b32.xlu0 %v306, 24
      %v789 = vpop.permute.xlu0 %788
      %790 = vrot.lane.b32.xlu0 %v307, 24
      %v791 = vpop.permute.xlu0 %790
      %792 = vrot.lane.b32.xlu0 %v308, 24
      %v793 = vpop.permute.xlu0 %792
      %794 = vrot.lane.b32.xlu0 %v309, 24
      %v795 = vpop.permute.xlu0 %794
      %796 = vrot.lane.b32.xlu0 %v310, 24
      %v797 = vpop.permute.xlu0 %796
      %798 = vrot.lane.b32.xlu0 %v311, 24
      %v799 = vpop.permute.xlu0 %798
      %800 = vrot.lane.b32.xlu0 %v312, 24
      %v801 = vpop.permute.xlu0 %800
      %802 = vrot.lane.b32.xlu0 %v313, 24
      %v803 = vpop.permute.xlu0 %802
      %804 = vrot.lane.b32.xlu0 %v314, 24
      %v805 = vpop.permute.xlu0 %804
      %806 = vrot.lane.b32.xlu0 %v315, 24
      %v807 = vpop.permute.xlu0 %806
      %808 = vrot.lane.b32.xlu0 %v316, 24
      %v809 = vpop.permute.xlu0 %808
      %810 = vrot.lane.b32.xlu0 %v317, 24
      %v811 = vpop.permute.xlu0 %810
      %812 = vrot.lane.b32.xlu0 %v318, 24
      %v813 = vpop.permute.xlu0 %812
      %814 = vrot.lane.b32.xlu0 %v319, 24
      %v815 = vpop.permute.xlu0 %814
      %vm832 = vcmask 23552
      %v833 = vsel %vm832, %v171, %v337
      %v834 = vsel %vm832, %v172, %v339
      %v835 = vsel %vm832, %v173, %v341
      %v836 = vsel %vm832, %v174, %v343
      %v837 = vsel %vm832, %v175, %v345
      %v838 = vsel %vm832, %v176, %v347
      %v839 = vsel %vm832, %v177, %v349
      %v840 = vsel %vm832, %v178, %v351
      %v841 = vsel %vm832, %v179, %v353
      %v842 = vsel %vm832, %v180, %v355
      %v843 = vsel %vm832, %v181, %v357
      %v844 = vsel %vm832, %v182, %v359
      %v845 = vsel %vm832, %v183, %v361
      %v846 = vsel %vm832, %v184, %v363
      %v847 = vsel %vm832, %v185, %v365
      %v848 = vsel %vm832, %v186, %v367
      %vm849 = vcmask 48128
      %v850 = vsel %vm849, %v833, %v401
      %v851 = vsel %vm849, %v834, %v403
      %v852 = vsel %vm849, %v835, %v405
      %v853 = vsel %vm849, %v836, %v407
      %v854 = vsel %vm849, %v837, %v409
      %v855 = vsel %vm849, %v838, %v411
      %v856 = vsel %vm849, %v839, %v413
      %v857 = vsel %vm849, %v840, %v415
      %v858 = vsel %vm849, %v841, %v417
      %v859 = vsel %vm849, %v842, %v419
      %v860 = vsel %vm849, %v843, %v421
      %v861 = vsel %vm849, %v844, %v423
      %v862 = vsel %vm849, %v845, %v425
      %v863 = vsel %vm849, %v846, %v427
      %v864 = vsel %vm849, %v847, %v429
      %v865 = vsel %vm849, %v848, %v431
      %vm866 = vcmask 72704
      %v867 = vsel %vm866, %v850, %v465
      %v868 = vsel %vm866, %v851, %v467
      %v869 = vsel %vm866, %v852, %v469
      %v870 = vsel %vm866, %v853, %v471
      %v871 = vsel %vm866, %v854, %v473
      %v872 = vsel %vm866, %v855, %v475
      %v873 = vsel %vm866, %v856, %v477
      %v874 = vsel %vm866, %v857, %v479
      %v875 = vsel %vm866, %v858, %v481
      %v876 = vsel %vm866, %v859, %v483
      %v877 = vsel %vm866, %v860, %v485
      %v878 = vsel %vm866, %v861, %v487
      %v879 = vsel %vm866, %v862, %v489
      %v880 = vsel %vm866, %v863, %v491
      %v881 = vsel %vm866, %v864, %v493
      %v882 = vsel %vm866, %v865, %v495
      %vm883 = vcmask 97280
      %v884 = vsel %vm883, %v867, %v529
      %v885 = vsel %vm883, %v868, %v531
      %v886 = vsel %vm883, %v869, %v533
      %v887 = vsel %vm883, %v870, %v535
      %v888 = vsel %vm883, %v871, %v537
      %v889 = vsel %vm883, %v872, %v539
      %v890 = vsel %vm883, %v873, %v541
      %v891 = vsel %vm883, %v874, %v543
      %v892 = vsel %vm883, %v875, %v545
      %v893 = vsel %vm883, %v876, %v547
      %v894 = vsel %vm883, %v877, %v549
      %v895 = vsel %vm883, %v878, %v551
      %v896 = vsel %vm883, %v879, %v553
      %v897 = vsel %vm883, %v880, %v555
      %v898 = vsel %vm883, %v881, %v557
      %v899 = vsel %vm883, %v882, %v559
      %vm900 = vcmask 121856
      %v901 = vsel %vm900, %v884, %v593
      %v902 = vsel %vm900, %v885, %v595
      %v903 = vsel %vm900, %v886, %v597
      %v904 = vsel %vm900, %v887, %v599
      %v905 = vsel %vm900, %v888, %v601
      %v906 = vsel %vm900, %v889, %v603
      %v907 = vsel %vm900, %v890, %v605
      %v908 = vsel %vm900, %v891, %v607
      %v909 = vsel %vm900, %v892, %v609
      %v910 = vsel %vm900, %v893, %v611
      %v911 = vsel %vm900, %v894, %v613
      %v912 = vsel %vm900, %v895, %v615
      %v913 = vsel %vm900, %v896, %v617
      %v914 = vsel %vm900, %v897, %v619
      %v915 = vsel %vm900, %v898, %v621
      %v916 = vsel %vm900, %v899, %v623
      %vm917 = vcmask 146432
      %v918 = vsel %vm917, %v901, %v657
      %v919 = vsel %vm917, %v902, %v659
      %v920 = vsel %vm917, %v903, %v661
      %v921 = vsel %vm917, %v904, %v663
      %v922 = vsel %vm917, %v905, %v665
      %v923 = vsel %vm917, %v906, %v667
      %v924 = vsel %vm917, %v907, %v669
      %v925 = vsel %vm917, %v908, %v671
      %v926 = vsel %vm917, %v909, %v673
      %v927 = vsel %vm917, %v910, %v675
      %v928 = vsel %vm917, %v911, %v677
      %v929 = vsel %vm917, %v912, %v679
      %v930 = vsel %vm917, %v913, %v681
      %v931 = vsel %vm917, %v914, %v683
      %v932 = vsel %vm917, %v915, %v685
      %v933 = vsel %vm917, %v916, %v687
      %vm934 = vcmask 171008
      %v935 = vsel %vm934, %v918, %v721
      %v936 = vsel %vm934, %v919, %v723
      %v937 = vsel %vm934, %v920, %v725
      %v938 = vsel %vm934, %v921, %v727
      %v939 = vsel %vm934, %v922, %v729
      %v940 = vsel %vm934, %v923, %v731
      %v941 = vsel %vm934, %v924, %v733
      %v942 = vsel %vm934, %v925, %v735
      %v943 = vsel %vm934, %v926, %v737
      %v944 = vsel %vm934, %v927, %v739
      %v945 = vsel %vm934, %v928, %v741
      %v946 = vsel %vm934, %v929, %v743
      %v947 = vsel %vm934, %v930, %v745
      %v948 = vsel %vm934, %v931, %v747
      %v949 = vsel %vm934, %v932, %v749
      %v950 = vsel %vm934, %v933, %v751
      %vm951 = vcmask 195584
      %v952 = vsel %vm951, %v935, %v785
      %v953 = vsel %vm951, %v936, %v787
      %v954 = vsel %vm951, %v937, %v789
      %v955 = vsel %vm951, %v938, %v791
      %v956 = vsel %vm951, %v939, %v793
      %v957 = vsel %vm951, %v940, %v795
      %v958 = vsel %vm951, %v941, %v797
      %v959 = vsel %vm951, %v942, %v799
      %v960 = vsel %vm951, %v943, %v801
      %v961 = vsel %vm951, %v944, %v803
      %v962 = vsel %vm951, %v945, %v805
      %v963 = vsel %vm951, %v946, %v807
      %v964 = vsel %vm951, %v947, %v809
      %v965 = vsel %vm951, %v948, %v811
      %v966 = vsel %vm951, %v949, %v813
      %v967 = vsel %vm951, %v950, %v815
      %vm968 = vcmask 220160
      %v969 = vsel %vm968, %v952, 0.0
      %v970 = vsel %vm968, %v953, 0.0
      %v971 = vsel %vm968, %v954, 0.0
      %v972 = vsel %vm968, %v955, 0.0
      %v973 = vsel %vm968, %v956, 0.0
      %v974 = vsel %vm968, %v957, 0.0
      %v975 = vsel %vm968, %v958, 0.0
      %v976 = vsel %vm968, %v959, 0.0
      %v977 = vsel %vm968, %v960, 0.0
      %v978 = vsel %vm968, %v961, 0.0
      %v979 = vsel %vm968, %v962, 0.0
      %v980 = vsel %vm968, %v963, 0.0
      %v981 = vsel %vm968, %v964, 0.0
      %v982 = vsel %vm968, %v965, 0.0
      %v983 = vsel %vm968, %v966, 0.0
      %v984 = vsel %vm968, %v967, 0.0
      %v985 = vld [vmem:[%s1] sm:$0xff]
      %v986 = vld [vmem:[%s1 + $0x8] sm:$0xff]
      %v987 = vld [vmem:[%s1 + $0x10] sm:$0xff]
      %v988 = vld [vmem:[%s1 + $0x18] sm:$0xff]
      %v989 = vld [vmem:[%s2] sm:$0x1]
      %v991 = vlaneseq
      %v992 = vshrl.u32 %v991, 7
      %v993 = vsub.s32 0, %v992
      %v994 = vrot.slane %v989, %v993
      %vm996 = vcmask 261120
      %v998 = vsel %vm996, %v969, 0
      %v1001 = vsel %vm996, %v970, 0
      %v1004 = vsel %vm996, %v971, 0
      %v1007 = vsel %vm996, %v972, 0
      %v1010 = vsel %vm996, %v973, 0
      %v1013 = vsel %vm996, %v974, 0
      %v1016 = vsel %vm996, %v975, 0
      %v1019 = vsel %vm996, %v976, 0
      %v1022 = vsel %vm996, %v977, 0
      %v1025 = vsel %vm996, %v978, 0
      %v1028 = vsel %vm996, %v979, 0
      %v1031 = vsel %vm996, %v980, 0
      %v1034 = vsel %vm996, %v981, 0
      %v1037 = vsel %vm996, %v982, 0
      %v1040 = vsel %vm996, %v983, 0
      %v1043 = vsel %vm996, %v984, 0
      %1045 = vmatprep.subr.mxu0 0.0
      %1046 = vmatpush1.msra.mxu0 0.0
      %1047 = vmatprep.subr.mxu0 0.0
      %1048 = vmatpush1.msra.mxu0 0.0
      %1049 = vmatprep.subr.mxu0 0.0
      %1050 = vmatpush1.msra.mxu0 0.0
      %1051 = vmatprep.subr.mxu0 0.0
      %1052 = vmatpush1.msra.mxu0 0.0
      %1053 = vmatprep.subr.mxu0 0.0
      %1054 = vmatpush1.msra.mxu0 0.0
      %1055 = vmatprep.subr.mxu0 0.0
      %1056 = vmatpush1.msra.mxu0 0.0
      %1057 = vmatprep.subr.mxu0 0.0
      %1058 = vmatpush1.msra.mxu0 0.0
      %1059 = vmatprep.subr.mxu0 0.0
      %1060 = vmatpush1.msra.mxu0 0.0
      %1061 = vmatprep.subr.mxu0 0.0
      %1062 = vmatpush1.msra.mxu0 0.0
      %1063 = vmatprep.subr.mxu0 0.0
      %1064 = vmatpush1.msra.mxu0 0.0
      %1065 = vmatprep.subr.mxu0 0.0
      %1066 = vmatpush1.msra.mxu0 0.0
      %1067 = vmatprep.subr.mxu0 0.0
      %1068 = vmatpush1.msra.mxu0 0.0
      %1069 = vmatprep.subr.mxu0 0.0
      %1070 = vmatpush1.msra.mxu0 %v988
      %1071 = vmatprep.subr.mxu0 0.0
      %1072 = vmatpush1.msra.mxu0 %v987
      %1073 = vmatprep.subr.mxu0 0.0
      %1074 = vmatpush1.msra.mxu0 %v986
      %1075 = vmatprep.subr.mxu0 0.0
      %1076 = vmatpush1.msra.mxu0 %v985
      %1077 = vmatprep.subr.mxu0 0.0
      %1078 = vmatpush2.msra.mxu0 0.0
      %1079 = vmatprep.subr.mxu0 0.0
      %1080 = vmatpush2.msra.mxu0 0.0
      %1081 = vmatprep.subr.mxu0 0.0
      %1082 = vmatpush2.msra.mxu0 0.0
      %1083 = vmatprep.subr.mxu0 0.0
      %1084 = vmatpush2.msra.mxu0 0.0
      %1085 = vmatprep.subr.mxu0 0.0
      %1086 = vmatpush2.msra.mxu0 0.0
      %1087 = vmatprep.subr.mxu0 0.0
      %1088 = vmatpush2.msra.mxu0 0.0
      %1089 = vmatprep.subr.mxu0 0.0
      %1090 = vmatpush2.msra.mxu0 0.0
      %1091 = vmatprep.subr.mxu0 0.0
      %1092 = vmatpush2.msra.mxu0 0.0
      %1093 = vmatprep.subr.mxu0 0.0
      %1094 = vmatpush2.msra.mxu0 0.0
      %1095 = vmatprep.subr.mxu0 0.0
      %1096 = vmatpush2.msra.mxu0 0.0
      %1097 = vmatprep.subr.mxu0 0.0
      %1098 = vmatpush2.msra.mxu0 0.0
      %1099 = vmatprep.subr.mxu0 0.0
      %1100 = vmatpush2.msra.mxu0 0.0
      %1101 = vmatprep.subr.mxu0 0.0
      %1102 = vmatpush2.msra.mxu0 0.0
      %1103 = vmatprep.subr.mxu0 0.0
      %1104 = vmatpush2.msra.mxu0 0.0
      %1105 = vmatprep.subr.mxu0 0.0
      %1106 = vmatpush2.msra.mxu0 0.0
      %1107 = vmatprep.subr.mxu0 0.0
      %1108 = vmatpush2.msra.mxu0 0.0
      %1109 = vmatprep.mubr.f32.mxu0 0.0
      %1110 = vmatmul.mubr.f32.gmra.mxu0 %v998
      %v1111 = vpop.f32.mrf.mxu0
      %v1112 = vadd.f32 %v994, %v1111
      %v1113 = vpop.f32.mrf.mxu0
      %1114 = vmatprep.mubr.f32.mxu0 0.0
      %1115 = vmatmul.mubr.f32.gmra.mxu0 %v1001
      %v1116 = vpop.f32.mrf.mxu0
      %v1117 = vadd.f32 %v994, %v1116
      %v1118 = vpop.f32.mrf.mxu0
      %1119 = vmatprep.mubr.f32.mxu0 0.0
      %1120 = vmatmul.mubr.f32.gmra.mxu0 %v1004
      %v1121 = vpop.f32.mrf.mxu0
      %v1122 = vadd.f32 %v994, %v1121
      %v1123 = vpop.f32.mrf.mxu0
      %1124 = vmatprep.mubr.f32.mxu0 0.0
      %1125 = vmatmul.mubr.f32.gmra.mxu0 %v1007
      %v1126 = vpop.f32.mrf.mxu0
      %v1127 = vadd.f32 %v994, %v1126
      %v1128 = vpop.f32.mrf.mxu0
      %1129 = vmatprep.mubr.f32.mxu0 0.0
      %1130 = vmatmul.mubr.f32.gmra.mxu0 %v1010
      %v1131 = vpop.f32.mrf.mxu0
      %v1132 = vadd.f32 %v994, %v1131
      %v1133 = vpop.f32.mrf.mxu0
      %1134 = vmatprep.mubr.f32.mxu0 0.0
      %1135 = vmatmul.mubr.f32.gmra.mxu0 %v1013
      %v1136 = vpop.f32.mrf.mxu0
      %v1137 = vadd.f32 %v994, %v1136
      %v1138 = vpop.f32.mrf.mxu0
      %1139 = vmatprep.mubr.f32.mxu0 0.0
      %1140 = vmatmul.mubr.f32.gmra.mxu0 %v1016
      %v1141 = vpop.f32.mrf.mxu0
      %v1142 = vadd.f32 %v994, %v1141
      %v1143 = vpop.f32.mrf.mxu0
      %1144 = vmatprep.mubr.f32.mxu0 0.0
      %1145 = vmatmul.mubr.f32.gmra.mxu0 %v1019
      %v1146 = vpop.f32.mrf.mxu0
      %v1147 = vadd.f32 %v994, %v1146
      %v1148 = vpop.f32.mrf.mxu0
      %1149 = vmatprep.mubr.f32.mxu0 0.0
      %1150 = vmatmul.mubr.f32.gmra.mxu0 %v1022
      %v1151 = vpop.f32.mrf.mxu0
      %v1152 = vadd.f32 %v994, %v1151
      %v1153 = vpop.f32.mrf.mxu0
      %1154 = vmatprep.mubr.f32.mxu0 0.0
      %1155 = vmatmul.mubr.f32.gmra.mxu0 %v1025
      %v1156 = vpop.f32.mrf.mxu0
      %v1157 = vadd.f32 %v994, %v1156
      %v1158 = vpop.f32.mrf.mxu0
      %1159 = vmatprep.mubr.f32.mxu0 0.0
      %1160 = vmatmul.mubr.f32.gmra.mxu0 %v1028
      %v1161 = vpop.f32.mrf.mxu0
      %v1162 = vadd.f32 %v994, %v1161
      %v1163 = vpop.f32.mrf.mxu0
      %1164 = vmatprep.mubr.f32.mxu0 0.0
      %1165 = vmatmul.mubr.f32.gmra.mxu0 %v1031
      %v1166 = vpop.f32.mrf.mxu0
      %v1167 = vadd.f32 %v994, %v1166
      %v1168 = vpop.f32.mrf.mxu0
      %1169 = vmatprep.mubr.f32.mxu0 0.0
      %1170 = vmatmul.mubr.f32.gmra.mxu0 %v1034
      %v1171 = vpop.f32.mrf.mxu0
      %v1172 = vadd.f32 %v994, %v1171
      %v1173 = vpop.f32.mrf.mxu0
      %1174 = vmatprep.mubr.f32.mxu0 0.0
      %1175 = vmatmul.mubr.f32.gmra.mxu0 %v1037
      %v1176 = vpop.f32.mrf.mxu0
      %v1177 = vadd.f32 %v994, %v1176
      %v1178 = vpop.f32.mrf.mxu0
      %1179 = vmatprep.mubr.f32.mxu0 0.0
      %1180 = vmatmul.mubr.f32.gmra.mxu0 %v1040
      %v1181 = vpop.f32.mrf.mxu0
      %v1182 = vadd.f32 %v994, %v1181
      %v1183 = vpop.f32.mrf.mxu0
      %1184 = vmatprep.mubr.f32.mxu0 0.0
      %1185 = vmatmul.mubr.f32.gmra.mxu0 %v1043
      %v1186 = vpop.f32.mrf.mxu0
      %v1187 = vadd.f32 %v994, %v1186
      %v1188 = vpop.f32.mrf.mxu0
      %1189 = vdwg.mxu0
      %vm1190 = vcmask 130048
      %1191 = vst.msk [vmem:[%s170] sm:$0xff] %vm1190, %v1112
      %1192 = vst.msk [vmem:[%s170 + $0x8] sm:$0xff] %vm1190, %v1117
      %1193 = vst.msk [vmem:[%s170 + $0x10] sm:$0xff] %vm1190, %v1122
      %1194 = vst.msk [vmem:[%s170 + $0x18] sm:$0xff] %vm1190, %v1127
      %1195 = vst.msk [vmem:[%s170 + $0x20] sm:$0xff] %vm1190, %v1132
      %1196 = vst.msk [vmem:[%s170 + $0x28] sm:$0xff] %vm1190, %v1137
      %1197 = vst.msk [vmem:[%s170 + $0x30] sm:$0xff] %vm1190, %v1142
      %1198 = vst.msk [vmem:[%s170 + $0x38] sm:$0xff] %vm1190, %v1147
      %1199 = vst.msk [vmem:[%s170 + $0x40] sm:$0xff] %vm1190, %v1152
      %1200 = vst.msk [vmem:[%s170 + $0x48] sm:$0xff] %vm1190, %v1157
      %1201 = vst.msk [vmem:[%s170 + $0x50] sm:$0xff] %vm1190, %v1162
      %1202 = vst.msk [vmem:[%s170 + $0x58] sm:$0xff] %vm1190, %v1167
      %1203 = vst.msk [vmem:[%s170 + $0x60] sm:$0xff] %vm1190, %v1172
      %1204 = vst.msk [vmem:[%s170 + $0x68] sm:$0xff] %vm1190, %v1177
      %1205 = vst.msk [vmem:[%s170 + $0x70] sm:$0xff] %vm1190, %v1182
      %1206 = vst.msk [vmem:[%s170 + $0x78] sm:$0xff] %vm1190, %v1187
      %p1207 = scmp.lt.s32.totalorder %s14, 1
      %s1208 = scalar_select %p1207, %s14, 1
      %s1209 = smul.addr %s1208, 16
      %s1210 = smul.addr %s1209, 8
      %s1211 = scalar_lea.vmem %s3, %s1210
      // Predicated region
      $region33: #{conv_tokenizer.2} parent=31 // pred_check
        %p1212 = pneg %p100
      $region34: #{conv_tokenizer.2} parent=31 // pred_check_branch
        %1214 = sbr.rel (%p1212) target = $region36
      $region35: #{conv_tokenizer.2} parent=31 // pred_region
        _
      $region36: #{conv_tokenizer.2} parent=31 // pred_fallthru
        _
    $region32: #{conv_tokenizer.2} parent=5 // pred_fallthru
      _
    %p1215 = scmp.le.s32.totalorder 2, %s9
    // Predicated region
    $region37: #{conv_tokenizer.2} parent=5 // pred_check
      %p1216 = pneg %p1215
    $region38: #{conv_tokenizer.2} parent=5 // pred_check_branch
      %1218 = sbr.rel (%p1216) target = $region40
    $region39: #{conv_tokenizer.2} parent=5 // pred_region
      %s1219 = ssub.s32 %s9, 2
      // Predicated region
      $region41: #{conv_tokenizer.2} parent=39 // pred_check
        %p1220 = pneg %p106
      $region42: #{conv_tokenizer.2} parent=39 // pred_check_branch
        %1222 = sbr.rel (%p1220) target = $region44
      $region43: #{conv_tokenizer.2} parent=39 // pred_region
        %p1223 = scmp.lt.s32.totalorder %s15, 1
        %s1224 = scalar_select %p1223, %s15, 1
        %s1225 = smul.addr %s1224, 16
        %s1226 = smul.addr %s1225, 8
        %s1227 = scalar_lea.vmem %s3, %s1226
      $region44: #{conv_tokenizer.2} parent=39 // pred_fallthru
        _
    $region40: #{conv_tokenizer.2} parent=5 // pred_fallthru
      _
  $region6: #{conv_tokenizer.2} parent=0 // loop_footer
    %s13 = sadd.s32 1, %s9
  $region7: #{conv_tokenizer.2} parent=0 // loop_footer_branch
    %8 = sbr.rel target = $region3
  $region8: #{conv_tokenizer.2} parent=0 // loop_exit
    _

// kernel: conv_tokenizer.3
$region0: #{conv_tokenizer.3}
  #allocation0 [shape = 'u32[]', space=smem, size = 0x4, offset = 0x4, fixed_abs, tag = 'smem constant byte address 0x4 - core index']
  #allocation1 [shape = 'u32[144,128]{1,0:T(1,128)}', space=vmem, size = 0x12000, scoped, tag = 'internal scratch']
  %s0 = inlined_call_operand.vmem [shape: f32[2,4,5,17,16], index: 0, kind: input, shape index: {}]
  %s1 = inlined_call_operand.vmem [shape: f32[144,32], index: 1, kind: input, shape index: {}]
  %s2 = inlined_call_operand.vmem [shape: f32[1,32], index: 2, kind: input, shape index: {}]
  %s3 = inlined_call_operand.vmem [shape: f32[2,64,32], index: 3, kind: output, shape index: {}]
  %s4 = sld [smem:[#allocation0]]
  $region45: #{conv_tokenizer.3} parent=0
    _
  %s6 = ssub.s32 1, %s4
  %s7 = scalar_select 0, %s6, %s4
  loop: start=0, step=1, limit=4
  $region2: #{conv_tokenizer.3} parent=0 // loop_pre_header
    _
  $region3: #{conv_tokenizer.3} parent=0 // loop_header
    %s9 = sphi 0, %s13
    %p10 = scmp.ge.s32.totalorder %s9, 4
    %s19 = sphi 0, %s21
    %s22 = sphi 0, %s19
    %s23 = sphi 0, %s22
    %s39 = sphi 0, %s23
    %s43 = sphi 0, %s43
    %s45 = sphi 0, %s43
    %s46 = sphi 0, %s45
    %s60 = sphi 0, %s46
    %s64 = sphi 0, %s64
    %s66 = sphi 0, %s64
    %s67 = sphi 0, %s66
    %s81 = sphi 0, %s67
    %s87 = sphi 0, %s89
    %s90 = sphi 0, %s87
    %s91 = sphi 0, %s90
    %s107 = sphi 0, %s91
  $region4: #{conv_tokenizer.3} parent=0 // loop_header_branch
    %12 = sbr.rel (%p10) target = $region8
  $region5: #{conv_tokenizer.3} parent=0 // loop_body
    %s14 = ssub.s32 %s9, 1
    %s15 = ssub.s32 %s9, 2
    %s16 = sadd.s32 %s9, 1
    %s17 = ssub.s32 %s9, %s16
    %p18 = scmp.eq.s32.totalorder %s17, 0
    %s20 = sadd.s32 %s19, 1
    %s21 = scalar_select %p18, %s19, %s20
    %p24 = pneg %p18
    %p25 = scmp.eq.s32.totalorder %s9, 1
    %p26 = por %p24, %p25
    %p27 = scmp.ne.s32.totalorder %s19, %s22
    %p28 = scmp.eq.s32.totalorder %s9, 0
    %p29 = por %p27, %p28
    %p30 = scmp.ne.s32.totalorder %s19, %s22
    %p31 = scmp.eq.s32.totalorder %s14, 1
    %p32 = por %p30, %p31
    %p33 = scmp.ne.s32.totalorder %s22, %s23
    %p34 = scmp.eq.s32.totalorder %s14, 0
    %p35 = por %p33, %p34
    %p36 = scmp.ne.s32.totalorder %s22, %s23
    %p37 = scmp.eq.s32.totalorder %s15, 1
    %p38 = por %p36, %p37
    %p40 = scmp.ne.s32.totalorder %s23, %s39
    %p41 = scmp.eq.s32.totalorder %s15, 0
    %p42 = por %p40, %p41
    %s44 = sadd.s32 %s43, 1
    %p47 = scmp.eq.s32.totalorder %s9, 1
    %p48 = scmp.ne.s32.totalorder %s43, %s45
    %p49 = scmp.eq.s32.totalorder %s9, 0
    %p50 = por %p48, %p49
    %p51 = scmp.ne.s32.totalorder %s43, %s45
    %p52 = scmp.eq.s32.totalorder %s14, 1
    %p53 = por %p51, %p52
    %p54 = scmp.ne.s32.totalorder %s45, %s46
    %p55 = scmp.eq.s32.totalorder %s14, 0
    %p56 = por %p54, %p55
    %p57 = scmp.ne.s32.totalorder %s45, %s46
    %p58 = scmp.eq.s32.totalorder %s15, 1
    %p59 = por %p57, %p58
    %p61 = scmp.ne.s32.totalorder %s46, %s60
    %p62 = scmp.eq.s32.totalorder %s15, 0
    %p63 = por %p61, %p62
    %s65 = sadd.s32 %s64, 1
    %p68 = scmp.eq.s32.totalorder %s9, 1
    %p69 = scmp.ne.s32.totalorder %s64, %s66
    %p70 = scmp.eq.s32.totalorder %s9, 0
    %p71 = por %p69, %p70
    %p72 = scmp.ne.s32.totalorder %s64, %s66
    %p73 = scmp.eq.s32.totalorder %s14, 1
    %p74 = por %p72, %p73
    %p75 = scmp.ne.s32.totalorder %s66, %s67
    %p76 = scmp.eq.s32.totalorder %s14, 0
    %p77 = por %p75, %p76
    %p78 = scmp.ne.s32.totalorder %s66, %s67
    %p79 = scmp.eq.s32.totalorder %s15, 1
    %p80 = por %p78, %p79
    %p82 = scmp.ne.s32.totalorder %s67, %s81
    %p83 = scmp.eq.s32.totalorder %s15, 0
    %p84 = por %p82, %p83
    %s85 = ssub.s32 %s9, %s16
    %p86 = scmp.eq.s32.totalorder %s85, 0
    %s88 = sadd.s32 %s87, 1
    %s89 = scalar_select %p86, %s87, %s88
    %p92 = pneg %p86
    %p93 = scmp.eq.s32.totalorder %s9, 1
    %p94 = por %p92, %p93
    %p95 = scmp.ne.s32.totalorder %s87, %s90
    %p96 = scmp.eq.s32.totalorder %s9, 0
    %p97 = por %p95, %p96
    %p98 = scmp.ne.s32.totalorder %s87, %s90
    %p99 = scmp.eq.s32.totalorder %s14, 1
    %p100 = por %p98, %p99
    %p101 = scmp.ne.s32.totalorder %s90, %s91
    %p102 = scmp.eq.s32.totalorder %s14, 0
    %p103 = por %p101, %p102
    %p104 = scmp.ne.s32.totalorder %s90, %s91
    %p105 = scmp.eq.s32.totalorder %s15, 1
    %p106 = por %p104, %p105
    %p108 = scmp.ne.s32.totalorder %s91, %s107
    %p109 = scmp.eq.s32.totalorder %s15, 0
    %p110 = por %p108, %p109
    %p111 = scmp.le.s32.totalorder 1, %s9
    %p112 = scmp.lt.s32.totalorder %s9, 3
    %p113 = pnand %p111, %p112
    %p114 = pneg %p113
    // Predicated region
    $region9: #{conv_tokenizer.3} parent=5 // pred_check
      _
    $region10: #{conv_tokenizer.3} parent=5 // pred_check_branch
      %116 = sbr.rel (%p113) target = $region12
    $region11: #{conv_tokenizer.3} parent=5 // pred_region
      %s117 = ssub.s32 %s9, 1
      // Predicated region
      $region13: #{conv_tokenizer.3} parent=11 // pred_check
        %p118 = pneg %p56
      $region14: #{conv_tokenizer.3} parent=11 // pred_check_branch
        %120 = sbr.rel (%p118) target = $region16
      $region15: #{conv_tokenizer.3} parent=11 // pred_region
        _
      $region16: #{conv_tokenizer.3} parent=11 // pred_fallthru
        _
      // Predicated region
      $region17: #{conv_tokenizer.3} parent=11 // pred_check
        %p121 = pneg %p77
      $region18: #{conv_tokenizer.3} parent=11 // pred_check_branch
        %123 = sbr.rel (%p121) target = $region20
      $region19: #{conv_tokenizer.3} parent=11 // pred_region
        _
      $region20: #{conv_tokenizer.3} parent=11 // pred_fallthru
        _
    $region12: #{conv_tokenizer.3} parent=5 // pred_fallthru
      _
    %p124 = scmp.lt.s32.totalorder %s9, 2
    // Predicated region
    $region21: #{conv_tokenizer.3} parent=5 // pred_check
      %p125 = pneg %p124
    $region22: #{conv_tokenizer.3} parent=5 // pred_check_branch
      %127 = sbr.rel (%p125) target = $region24
    $region23: #{conv_tokenizer.3} parent=5 // pred_region
      // Predicated region
      $region25: #{conv_tokenizer.3} parent=23 // pred_check
        %p128 = pneg %p29
      $region26: #{conv_tokenizer.3} parent=23 // pred_check_branch
        %130 = sbr.rel (%p128) target = $region28
      $region27: #{conv_tokenizer.3} parent=23 // pred_region
        %p131 = scmp.lt.s32.totalorder %s9, 1
        %s132 = scalar_select %p131, %s9, 1
        %s133 = smul.addr %s132, 60
        %s134 = smul.addr %s133, 8
        %s135 = scalar_lea.vmem %s0, %s134
      $region28: #{conv_tokenizer.3} parent=23 // pred_fallthru
        _
    $region24: #{conv_tokenizer.3} parent=5 // pred_fallthru
      _
    %p136 = scmp.le.s32.totalorder 1, %s9
    %p137 = scmp.lt.s32.totalorder %s9, 3
    %p138 = pnand %p136, %p137
    %p139 = pneg %p138
    // Predicated region
    $region29: #{conv_tokenizer.3} parent=5 // pred_check
      _
    $region30: #{conv_tokenizer.3} parent=5 // pred_check_branch
      %141 = sbr.rel (%p138) target = $region32
    $region31: #{conv_tokenizer.3} parent=5 // pred_region
      %s142 = ssub.s32 %s9, 1
      %p143 = scmp.lt.s32.totalorder %s14, 1
      %s144 = scalar_select %p143, %s14, 1
      %s145 = smul.addr %s144, 60
      %s146 = smul.addr %s145, 8
      %s147 = scalar_lea.vmem %s0, %s146
      %p148 = pneg %p35
      %p149 = pneg %p32
      %p150 = pneg %p56
      %p151 = pneg %p53
      %p152 = pneg %p77
      %p153 = pneg %p74
      %p154 = pneg %p103
      %p155 = pneg %p100
      %p156 = scmp.lt.s32.totalorder %s14, 1
      %s157 = scalar_select %p156, %s14, 1
      %s158 = smul.addr %s157, 8
      %s159 = smul.addr %s158, 8
      %s160 = scalar_lea.vmem %s3, %s159
      %p161 = scmp.lt.s32.totalorder %s14, 1
      %s162 = scalar_select %p161, %s14, 1
      %s163 = smul.addr %s162, 60
      %s164 = smul.addr %s163, 8
      %s165 = scalar_lea.vmem %s0, %s164
      %p166 = scmp.lt.s32.totalorder %s14, 1
      %s167 = scalar_select %p166, %s14, 1
      %s168 = smul.addr %s167, 8
      %s169 = smul.addr %s168, 8
      %s170 = scalar_lea.vmem %s3, %s169
      %v171 = vld [vmem:[%s165] sm:$0xff]
      %v172 = vld [vmem:[%s165 + $0x8] sm:$0xff]
      %v173 = vld [vmem:[%s165 + $0x18] sm:$0xff]
      %v174 = vld [vmem:[%s165 + $0x20] sm:$0xff]
      %v175 = vld [vmem:[%s165 + $0x30] sm:$0xff]
      %v176 = vld [vmem:[%s165 + $0x38] sm:$0xff]
      %v177 = vld [vmem:[%s165 + $0x48] sm:$0xff]
      %v178 = vld [vmem:[%s165 + $0x50] sm:$0xff]
      %s179 = scalar_lea.vmem %s165, 120
      %v180 = vld [vmem:[%s179] sm:$0xff]
      %v181 = vld [vmem:[%s179 + $0x8] sm:$0xff]
      %v182 = vld [vmem:[%s179 + $0x18] sm:$0xff]
      %v183 = vld [vmem:[%s179 + $0x20] sm:$0xff]
      %v184 = vld [vmem:[%s179 + $0x30] sm:$0xff]
      %v185 = vld [vmem:[%s179 + $0x38] sm:$0xff]
      %v186 = vld [vmem:[%s179 + $0x48] sm:$0xff]
      %v187 = vld [vmem:[%s179 + $0x50] sm:$0xff]
      %v188 = vld [vmem:[%s165 + $0x1] sm:$0xff]
      %v189 = vld [vmem:[%s165 + $0x9] sm:$0xff]
      %v190 = vld [vmem:[%s165 + $0x19] sm:$0xff]
      %v191 = vld [vmem:[%s165 + $0x21] sm:$0xff]
      %v192 = vld [vmem:[%s165 + $0x31] sm:$0xff]
      %v193 = vld [vmem:[%s165 + $0x39] sm:$0xff]
      %v194 = vld [vmem:[%s165 + $0x49] sm:$0xff]
      %v195 = vld [vmem:[%s165 + $0x51] sm:$0xff]
      %s196 = scalar_lea.vmem %s165, 240
      %v197 = vld [vmem:[%s196] sm:$0xff]
      %v198 = vld [vmem:[%s196 + $0x8] sm:$0xff]
      %v199 = vld [vmem:[%s196 + $0x18] sm:$0xff]
      %v200 = vld [vmem:[%s196 + $0x20] sm:$0xff]
      %v201 = vld [vmem:[%s196 + $0x30] sm:$0xff]
      %v202 = vld [vmem:[%s196 + $0x38] sm:$0xff]
      %v203 = vld [vmem:[%s196 + $0x48] sm:$0xff]
      %v204 = vld [vmem:[%s196 + $0x50] sm:$0xff]
      %s205 = scalar_lea.vmem %s165, 360
      %v206 = vld [vmem:[%s205] sm:$0xff]
      %v207 = vld [vmem:[%s205 + $0x8] sm:$0xff]
      %v208 = vld [vmem:[%s205 + $0x18] sm:$0xff]
      %v209 = vld [vmem:[%s205 + $0x20] sm:$0xff]
      %v210 = vld [vmem:[%s205 + $0x30] sm:$0xff]
      %v211 = vld [vmem:[%s205 + $0x38] sm:$0xff]
      %v212 = vld [vmem:[%s205 + $0x48] sm:$0xff]
      %v213 = vld [vmem:[%s205 + $0x50] sm:$0xff]
      %v214 = vld [vmem:[%s196 + $0x1] sm:$0xff]
      %v215 = vld [vmem:[%s196 + $0x9] sm:$0xff]
      %v216 = vld [vmem:[%s196 + $0x19] sm:$0xff]
      %v217 = vld [vmem:[%s196 + $0x21] sm:$0xff]
      %v218 = vld [vmem:[%s196 + $0x31] sm:$0xff]
      %v219 = vld [vmem:[%s196 + $0x39] sm:$0xff]
      %v220 = vld [vmem:[%s196 + $0x49] sm:$0xff]
      %v221 = vld [vmem:[%s196 + $0x51] sm:$0xff]
      %s222 = scalar_lea.vmem %s165, 24
      %v223 = vld [vmem:[%s222] sm:$0xff]
      %v224 = vld [vmem:[%s222 + $0x8] sm:$0xff]
      %v225 = vld [vmem:[%s222 + $0x18] sm:$0xff]
      %v226 = vld [vmem:[%s222 + $0x20] sm:$0xff]
      %v227 = vld [vmem:[%s222 + $0x30] sm:$0xff]
      %v228 = vld [vmem:[%s222 + $0x38] sm:$0xff]
      %v229 = vld [vmem:[%s222 + $0x48] sm:$0xff]
      %v230 = vld [vmem:[%s222 + $0x50] sm:$0xff]
      %s231 = scalar_lea.vmem %s165, 144
      %v232 = vld [vmem:[%s231] sm:$0xff]
      %v233 = vld [vmem:[%s231 + $0x8] sm:$0xff]
      %v234 = vld [vmem:[%s231 + $0x18] sm:$0xff]
      %v235 = vld [vmem:[%s231 + $0x20] sm:$0xff]
      %v236 = vld [vmem:[%s231 + $0x30] sm:$0xff]
      %v237 = vld [vmem:[%s231 + $0x38] sm:$0xff]
      %v238 = vld [vmem:[%s231 + $0x48] sm:$0xff]
      %v239 = vld [vmem:[%s231 + $0x50] sm:$0xff]
      %v240 = vld [vmem:[%s222 + $0x1] sm:$0xff]
      %v241 = vld [vmem:[%s222 + $0x9] sm:$0xff]
      %v242 = vld [vmem:[%s222 + $0x19] sm:$0xff]
      %v243 = vld [vmem:[%s222 + $0x21] sm:$0xff]
      %v244 = vld [vmem:[%s222 + $0x31] sm:$0xff]
      %v245 = vld [vmem:[%s222 + $0x39] sm:$0xff]
      %v246 = vld [vmem:[%s222 + $0x49] sm:$0xff]
      %v247 = vld [vmem:[%s222 + $0x51] sm:$0xff]
      %256 = vrot.lane.b32.xlu0 %v180, 16
      %v257 = vpop.permute.xlu0 %256
      %258 = vrot.lane.b32.xlu0 %v181, 16
      %v259 = vpop.permute.xlu0 %258
      %260 = vrot.lane.b32.xlu0 %v182, 16
      %v261 = vpop.permute.xlu0 %260
      %262 = vrot.lane.b32.xlu0 %v183, 16
      %v263 = vpop.permute.xlu0 %262
      %264 = vrot.lane.b32.xlu0 %v184, 16
      %v265 = vpop.permute.xlu0 %264
      %266 = vrot.lane.b32.xlu0 %v185, 16
      %v267 = vpop.permute.xlu0 %266
      %268 = vrot.lane.b32.xlu0 %v186, 16
      %v269 = vpop.permute.xlu0 %268
      %270 = vrot.lane.b32.xlu0 %v187, 16
      %v271 = vpop.permute.xlu0 %270
      %288 = vrot.lane.b32.xlu0 %v188, 32
      %v289 = vpop.permute.xlu0 %288
      %290 = vrot.lane.b32.xlu0 %v189, 32
      %v291 = vpop.permute.xlu0 %290
      %292 = vrot.lane.b32.xlu0 %v190, 32
      %v293 = vpop.permute.xlu0 %292
      %294 = vrot.lane.b32.xlu0 %v191, 32
      %v295 = vpop.permute.xlu0 %294
      %296 = vrot.lane.b32.xlu0 %v192, 32
      %v297 = vpop.permute.xlu0 %296
      %298 = vrot.lane.b32.xlu0 %v193, 32
      %v299 = vpop.permute.xlu0 %298
      %300 = vrot.lane.b32.xlu0 %v194, 32
      %v301 = vpop.permute.xlu0 %300
      %302 = vrot.lane.b32.xlu0 %v195, 32
      %v303 = vpop.permute.xlu0 %302
      %320 = vrot.lane.b32.xlu0 %v197, 48
      %v321 = vpop.permute.xlu0 %320
      %322 = vrot.lane.b32.xlu0 %v198, 48
      %v323 = vpop.permute.xlu0 %322
      %324 = vrot.lane.b32.xlu0 %v199, 48
      %v325 = vpop.permute.xlu0 %324
      %326 = vrot.lane.b32.xlu0 %v200, 48
      %v327 = vpop.permute.xlu0 %326
      %328 = vrot.lane.b32.xlu0 %v201, 48
      %v329 = vpop.permute.xlu0 %328
      %330 = vrot.lane.b32.xlu0 %v202, 48
      %v331 = vpop.permute.xlu0 %330
      %332 = vrot.lane.b32.xlu0 %v203, 48
      %v333 = vpop.permute.xlu0 %332
      %334 = vrot.lane.b32.xlu0 %v204, 48
      %v335 = vpop.permute.xlu0 %334
      %352 = vrot.lane.b32.xlu0 %v206, 64
      %v353 = vpop.permute.xlu0 %352
      %354 = vrot.lane.b32.xlu0 %v207, 64
      %v355 = vpop.permute.xlu0 %354
      %356 = vrot.lane.b32.xlu0 %v208, 64
      %v357 = vpop.permute.xlu0 %356
      %358 = vrot.lane.b32.xlu0 %v209, 64
      %v359 = vpop.permute.xlu0 %358
      %360 = vrot.lane.b32.xlu0 %v210, 64
      %v361 = vpop.permute.xlu0 %360
      %362 = vrot.lane.b32.xlu0 %v211, 64
      %v363 = vpop.permute.xlu0 %362
      %364 = vrot.lane.b32.xlu0 %v212, 64
      %v365 = vpop.permute.xlu0 %364
      %366 = vrot.lane.b32.xlu0 %v213, 64
      %v367 = vpop.permute.xlu0 %366
      %384 = vrot.lane.b32.xlu0 %v214, 80
      %v385 = vpop.permute.xlu0 %384
      %386 = vrot.lane.b32.xlu0 %v215, 80
      %v387 = vpop.permute.xlu0 %386
      %388 = vrot.lane.b32.xlu0 %v216, 80
      %v389 = vpop.permute.xlu0 %388
      %390 = vrot.lane.b32.xlu0 %v217, 80
      %v391 = vpop.permute.xlu0 %390
      %392 = vrot.lane.b32.xlu0 %v218, 80
      %v393 = vpop.permute.xlu0 %392
      %394 = vrot.lane.b32.xlu0 %v219, 80
      %v395 = vpop.permute.xlu0 %394
      %396 = vrot.lane.b32.xlu0 %v220, 80
      %v397 = vpop.permute.xlu0 %396
      %398 = vrot.lane.b32.xlu0 %v221, 80
      %v399 = vpop.permute.xlu0 %398
      %416 = vrot.lane.b32.xlu0 %v223, 96
      %v417 = vpop.permute.xlu0 %416
      %418 = vrot.lane.b32.xlu0 %v224, 96
      %v419 = vpop.permute.xlu0 %418
      %420 = vrot.lane.b32.xlu0 %v225, 96
      %v421 = vpop.permute.xlu0 %420
      %422 = vrot.lane.b32.xlu0 %v226, 96
      %v423 = vpop.permute.xlu0 %422
      %424 = vrot.lane.b32.xlu0 %v227, 96
      %v425 = vpop.permute.xlu0 %424
      %426 = vrot.lane.b32.xlu0 %v228, 96
      %v427 = vpop.permute.xlu0 %426
      %428 = vrot.lane.b32.xlu0 %v229, 96
      %v429 = vpop.permute.xlu0 %428
      %430 = vrot.lane.b32.xlu0 %v230, 96
      %v431 = vpop.permute.xlu0 %430
      %448 = vrot.lane.b32.xlu0 %v232, 112
      %v449 = vpop.permute.xlu0 %448
      %450 = vrot.lane.b32.xlu0 %v233, 112
      %v451 = vpop.permute.xlu0 %450
      %452 = vrot.lane.b32.xlu0 %v234, 112
      %v453 = vpop.permute.xlu0 %452
      %454 = vrot.lane.b32.xlu0 %v235, 112
      %v455 = vpop.permute.xlu0 %454
      %456 = vrot.lane.b32.xlu0 %v236, 112
      %v457 = vpop.permute.xlu0 %456
      %458 = vrot.lane.b32.xlu0 %v237, 112
      %v459 = vpop.permute.xlu0 %458
      %460 = vrot.lane.b32.xlu0 %v238, 112
      %v461 = vpop.permute.xlu0 %460
      %462 = vrot.lane.b32.xlu0 %v239, 112
      %v463 = vpop.permute.xlu0 %462
      %vm472 = vcmask 130048
      %v473 = vsel %vm472, %v171, %v257
      %v474 = vsel %vm472, %v172, %v259
      %v475 = vsel %vm472, %v173, %v261
      %v476 = vsel %vm472, %v174, %v263
      %v477 = vsel %vm472, %v175, %v265
      %v478 = vsel %vm472, %v176, %v267
      %v479 = vsel %vm472, %v177, %v269
      %v480 = vsel %vm472, %v178, %v271
      %vm481 = vcmask 261120
      %v482 = vsel %vm481, %v473, %v289
      %v483 = vsel %vm481, %v474, %v291
      %v484 = vsel %vm481, %v475, %v293
      %v485 = vsel %vm481, %v476, %v295
      %v486 = vsel %vm481, %v477, %v297
      %v487 = vsel %vm481, %v478, %v299
      %v488 = vsel %vm481, %v479, %v301
      %v489 = vsel %vm481, %v480, %v303
      %vm490 = vcmask 392192
      %v491 = vsel %vm490, %v482, %v321
      %v492 = vsel %vm490, %v483, %v323
      %v493 = vsel %vm490, %v484, %v325
      %v494 = vsel %vm490, %v485, %v327
      %v495 = vsel %vm490, %v486, %v329
      %v496 = vsel %vm490, %v487, %v331
      %v497 = vsel %vm490, %v488, %v333
      %v498 = vsel %vm490, %v489, %v335
      %vm499 = vcmask 523264
      %v500 = vsel %vm499, %v491, %v353
      %v501 = vsel %vm499, %v492, %v355
      %v502 = vsel %vm499, %v493, %v357
      %v503 = vsel %vm499, %v494, %v359
      %v504 = vsel %vm499, %v495, %v361
      %v505 = vsel %vm499, %v496, %v363
      %v506 = vsel %vm499, %v497, %v365
      %v507 = vsel %vm499, %v498, %v367
      %vm508 = vcmask 654336
      %v509 = vsel %vm508, %v500, %v385
      %v510 = vsel %vm508, %v501, %v387
      %v511 = vsel %vm508, %v502, %v389
      %v512 = vsel %vm508, %v503, %v391
      %v513 = vsel %vm508, %v504, %v393
      %v514 = vsel %vm508, %v505, %v395
      %v515 = vsel %vm508, %v506, %v397
      %v516 = vsel %vm508, %v507, %v399
      %vm517 = vcmask 785408
      %v518 = vsel %vm517, %v509, %v417
      %v519 = vsel %vm517, %v510, %v419
      %v520 = vsel %vm517, %v511, %v421
      %v521 = vsel %vm517, %v512, %v423
      %v522 = vsel %vm517, %v513, %v425
      %v523 = vsel %vm517, %v514, %v427
      %v524 = vsel %vm517, %v515, %v429
      %v525 = vsel %vm517, %v516, %v431
      %vm526 = vcmask 916480
      %v527 = vsel %vm526, %v518, %v449
      %v528 = vsel %vm526, %v519, %v451
      %v529 = vsel %vm526, %v520, %v453
      %v530 = vsel %vm526, %v521, %v455
      %v531 = vsel %vm526, %v522, %v457
      %v532 = vsel %vm526, %v523, %v459
      %v533 = vsel %vm526, %v524, %v461
      %v534 = vsel %vm526, %v525, %v463
      %v535 = vld [vmem:[%s1] sm:$0xff]
      %v536 = vld [vmem:[%s1 + $0x8] sm:$0xff]
      %v537 = vld [vmem:[%s1 + $0x10] sm:$0xff]
      %v538 = vld [vmem:[%s1 + $0x18] sm:$0xff]
      %v539 = vld [vmem:[%s1 + $0x20] sm:$0xff]
      %v540 = vld [vmem:[%s1 + $0x28] sm:$0xff]
      %v541 = vld [vmem:[%s1 + $0x30] sm:$0xff]
      %v542 = vld [vmem:[%s1 + $0x38] sm:$0xff]
      %v543 = vld [vmem:[%s1 + $0x40] sm:$0xff]
      %v544 = vld [vmem:[%s1 + $0x48] sm:$0xff]
      %v545 = vld [vmem:[%s1 + $0x50] sm:$0xff]
      %v546 = vld [vmem:[%s1 + $0x58] sm:$0xff]
      %v547 = vld [vmem:[%s1 + $0x60] sm:$0xff]
      %v548 = vld [vmem:[%s1 + $0x68] sm:$0xff]
      %v549 = vld [vmem:[%s1 + $0x70] sm:$0xff]
      %v550 = vld [vmem:[%s1 + $0x78] sm:$0xff]
      %v551 = vld [vmem:[%s1 + $0x80] sm:$0xff]
      %v552 = vld [vmem:[%s1 + $0x88] sm:$0xff]
      %v553 = vld [vmem:[%s2] sm:$0x1]
      %v555 = vlaneseq
      %v556 = vshrl.u32 %v555, 7
      %v557 = vsub.s32 0, %v556
      %v558 = vrot.slane %v553, %v557
      %v561 = vsel %vm472, %v240, 0
      %v564 = vsel %vm472, %v241, 0
      %v567 = vsel %vm472, %v242, 0
      %v570 = vsel %vm472, %v243, 0
      %v573 = vsel %vm472, %v244, 0
      %v576 = vsel %vm472, %v245, 0
      %v579 = vsel %vm472, %v246, 0
      %v582 = vsel %vm472, %v247, 0
      %584 = vmatprep.subr.mxu0 0.0
      %585 = vmatpush1.msra.mxu0 %v550
      %586 = vmatprep.subr.mxu0 0.0
      %587 = vmatpush1.msra.mxu0 %v549
      %588 = vmatprep.subr.mxu0 0.0
      %589 = vmatpush1.msra.mxu0 %v548
      %590 = vmatprep.subr.mxu0 0.0
      %591 = vmatpush1.msra.mxu0 %v547
      %592 = vmatprep.subr.mxu0 0.0
      %593 = vmatpush1.msra.mxu0 %v546
      %594 = vmatprep.subr.mxu0 0.0
      %595 = vmatpush1.msra.mxu0 %v545
      %596 = vmatprep.subr.mxu0 0.0
      %597 = vmatpush1.msra.mxu0 %v544
      %598 = vmatprep.subr.mxu0 0.0
      %599 = vmatpush1.msra.mxu0 %v543
      %600 = vmatprep.subr.mxu0 0.0
      %601 = vmatpush1.msra.mxu0 %v542
      %602 = vmatprep.subr.mxu0 0.0
      %603 = vmatpush1.msra.mxu0 %v541
      %604 = vmatprep.subr.mxu0 0.0
      %605 = vmatpush1.msra.mxu0 %v540
      %606 = vmatprep.subr.mxu0 0.0
      %607 = vmatpush1.msra.mxu0 %v539
      %608 = vmatprep.subr.mxu0 0.0
      %609 = vmatpush1.msra.mxu0 %v538
      %610 = vmatprep.subr.mxu0 0.0
      %611 = vmatpush1.msra.mxu0 %v537
      %612 = vmatprep.subr.mxu0 0.0
      %613 = vmatpush1.msra.mxu0 %v536
      %614 = vmatprep.subr.mxu0 0.0
      %615 = vmatpush1.msra.mxu0 %v535
      %616 = vmatprep.subr.mxu0 0.0
      %617 = vmatpush2.msra.mxu0 0.0
      %618 = vmatprep.subr.mxu0 0.0
      %619 = vmatpush2.msra.mxu0 0.0
      %620 = vmatprep.subr.mxu0 0.0
      %621 = vmatpush2.msra.mxu0 0.0
      %622 = vmatprep.subr.mxu0 0.0
      %623 = vmatpush2.msra.mxu0 0.0
      %624 = vmatprep.subr.mxu0 0.0
      %625 = vmatpush2.msra.mxu0 0.0
      %626 = vmatprep.subr.mxu0 0.0
      %627 = vmatpush2.msra.mxu0 0.0
      %628 = vmatprep.subr.mxu0 0.0
      %629 = vmatpush2.msra.mxu0 0.0
      %630 = vmatprep.subr.mxu0 0.0
      %631 = vmatpush2.msra.mxu0 0.0
      %632 = vmatprep.subr.mxu0 0.0
      %633 = vmatpush2.msra.mxu0 0.0
      %634 = vmatprep.subr.mxu0 0.0
      %635 = vmatpush2.msra.mxu0 0.0
      %636 = vmatprep.subr.mxu0 0.0
      %637 = vmatpush2.msra.mxu0 0.0
      %638 = vmatprep.subr.mxu0 0.0
      %639 = vmatpush2.msra.mxu0 0.0
      %640 = vmatprep.subr.mxu0 0.0
      %641 = vmatpush2.msra.mxu0 0.0
      %642 = vmatprep.subr.mxu0 0.0
      %643 = vmatpush2.msra.mxu0 0.0
      %644 = vmatprep.subr.mxu0 0.0
      %645 = vmatpush2.msra.mxu0 %v552
      %646 = vmatprep.subr.mxu0 0.0
      %647 = vmatpush2.msra.mxu0 %v551
      %648 = vmatprep.mubr.f32.mxu0 %v561
      %649 = vmatmul.mubr.f32.gmra.mxu0 %v527
      %v650 = vpop.f32.mrf.mxu0
      %v651 = vadd.f32 %v558, %v650
      %v652 = vpop.f32.mrf.mxu0
      %653 = vmatprep.mubr.f32.mxu0 %v564
      %654 = vmatmul.mubr.f32.gmra.mxu0 %v528
      %v655 = vpop.f32.mrf.mxu0
      %v656 = vadd.f32 %v558, %v655
      %v657 = vpop.f32.mrf.mxu0
      %658 = vmatprep.mubr.f32.mxu0 %v567
      %659 = vmatmul.mubr.f32.gmra.mxu0 %v529
      %v660 = vpop.f32.mrf.mxu0
      %v661 = vadd.f32 %v558, %v660
      %v662 = vpop.f32.mrf.mxu0
      %663 = vmatprep.mubr.f32.mxu0 %v570
      %664 = vmatmul.mubr.f32.gmra.mxu0 %v530
      %v665 = vpop.f32.mrf.mxu0
      %v666 = vadd.f32 %v558, %v665
      %v667 = vpop.f32.mrf.mxu0
      %668 = vmatprep.mubr.f32.mxu0 %v573
      %669 = vmatmul.mubr.f32.gmra.mxu0 %v531
      %v670 = vpop.f32.mrf.mxu0
      %v671 = vadd.f32 %v558, %v670
      %v672 = vpop.f32.mrf.mxu0
      %673 = vmatprep.mubr.f32.mxu0 %v576
      %674 = vmatmul.mubr.f32.gmra.mxu0 %v532
      %v675 = vpop.f32.mrf.mxu0
      %v676 = vadd.f32 %v558, %v675
      %v677 = vpop.f32.mrf.mxu0
      %678 = vmatprep.mubr.f32.mxu0 %v579
      %679 = vmatmul.mubr.f32.gmra.mxu0 %v533
      %v680 = vpop.f32.mrf.mxu0
      %v681 = vadd.f32 %v558, %v680
      %v682 = vpop.f32.mrf.mxu0
      %683 = vmatprep.mubr.f32.mxu0 %v582
      %684 = vmatmul.mubr.f32.gmra.mxu0 %v534
      %v685 = vpop.f32.mrf.mxu0
      %v686 = vadd.f32 %v558, %v685
      %v687 = vpop.f32.mrf.mxu0
      %688 = vdwg.mxu0
      %689 = vst.msk [vmem:[%s170] sm:$0xff] %vm481, %v651
      %690 = vst.msk [vmem:[%s170 + $0x8] sm:$0xff] %vm481, %v656
      %691 = vst.msk [vmem:[%s170 + $0x10] sm:$0xff] %vm481, %v661
      %692 = vst.msk [vmem:[%s170 + $0x18] sm:$0xff] %vm481, %v666
      %693 = vst.msk [vmem:[%s170 + $0x20] sm:$0xff] %vm481, %v671
      %694 = vst.msk [vmem:[%s170 + $0x28] sm:$0xff] %vm481, %v676
      %695 = vst.msk [vmem:[%s170 + $0x30] sm:$0xff] %vm481, %v681
      %696 = vst.msk [vmem:[%s170 + $0x38] sm:$0xff] %vm481, %v686
      %p697 = scmp.lt.s32.totalorder %s14, 1
      %s698 = scalar_select %p697, %s14, 1
      %s699 = smul.addr %s698, 8
      %s700 = smul.addr %s699, 8
      %s701 = scalar_lea.vmem %s3, %s700
      // Predicated region
      $region33: #{conv_tokenizer.3} parent=31 // pred_check
        %p702 = pneg %p100
      $region34: #{conv_tokenizer.3} parent=31 // pred_check_branch
        %704 = sbr.rel (%p702) target = $region36
      $region35: #{conv_tokenizer.3} parent=31 // pred_region
        _
      $region36: #{conv_tokenizer.3} parent=31 // pred_fallthru
        _
    $region32: #{conv_tokenizer.3} parent=5 // pred_fallthru
      _
    %p705 = scmp.le.s32.totalorder 2, %s9
    // Predicated region
    $region37: #{conv_tokenizer.3} parent=5 // pred_check
      %p706 = pneg %p705
    $region38: #{conv_tokenizer.3} parent=5 // pred_check_branch
      %708 = sbr.rel (%p706) target = $region40
    $region39: #{conv_tokenizer.3} parent=5 // pred_region
      %s709 = ssub.s32 %s9, 2
      // Predicated region
      $region41: #{conv_tokenizer.3} parent=39 // pred_check
        %p710 = pneg %p106
      $region42: #{conv_tokenizer.3} parent=39 // pred_check_branch
        %712 = sbr.rel (%p710) target = $region44
      $region43: #{conv_tokenizer.3} parent=39 // pred_region
        %p713 = scmp.lt.s32.totalorder %s15, 1
        %s714 = scalar_select %p713, %s15, 1
        %s715 = smul.addr %s714, 8
        %s716 = smul.addr %s715, 8
        %s717 = scalar_lea.vmem %s3, %s716
      $region44: #{conv_tokenizer.3} parent=39 // pred_fallthru
        _
    $region40: #{conv_tokenizer.3} parent=5 // pred_fallthru
      _
  $region6: #{conv_tokenizer.3} parent=0 // loop_footer
    %s13 = sadd.s32 1, %s9
  $region7: #{conv_tokenizer.3} parent=0 // loop_footer_branch
    %8 = sbr.rel target = $region3
  $region8: #{conv_tokenizer.3} parent=0 // loop_exit
    _

</llo_original>
